<compile_context>
chip_gen: v7x
topology: tpu7x:2x2x1
jax: 0.10.0
libtpu: 0.0.40
codegen_flags: <defaults>
</compile_context>

<pallas_src>
import functools

import jax
import jax.numpy as jnp
from jax.experimental import pallas as pl
from jax.experimental.pallas import tpu as pltpu

HIDDEN = 32


def mlp_kernel(x_ref,
               w1_ref, b1_ref,
               w2_ref, b2_ref,
               w3_ref, b3_ref,
               w4_ref, b4_ref,
               w5_ref, b5_ref,
               o_ref,
               *, compute_dtype):
    # Activation: optionally run the transcendental in bf16 (v6e/v7x EUP),
    # cast back to f32 for the next MXU matmul. With f32 this is a no-op cast.
    act = lambda z: jnp.tanh(z.astype(compute_dtype)).astype(jnp.float32)

    xt = x_ref[...]                                        # (1, TM), batch on lanes

    # Layer 1: Linear(1, 32). K=1 -> rank-1 broadcast multiply on the VPU.
    # (32,1) * (1,TM) + (32,TM) -> (32,TM); bias add reads full vregs.
    h = act(w1_ref[...] * xt + b1_ref[...])

    # Hidden layers: 32x32 matmuls on the MXU, f32 accumulation, lane-full bias.
    h = act(jnp.dot(w2_ref[...], h, preferred_element_type=jnp.float32) + b2_ref[...])
    h = act(jnp.dot(w3_ref[...], h, preferred_element_type=jnp.float32) + b3_ref[...])
    h = act(jnp.dot(w4_ref[...], h, preferred_element_type=jnp.float32) + b4_ref[...])

    # Layer 5: Linear(32, 1). (1,32)@(32,TM) on the MXU (it is idle anyway),
    # instead of a VPU multiply + sublane XLU reduce.
    out = jnp.dot(w5_ref[...], h, preferred_element_type=jnp.float32) + b5_ref[...]

    o_ref[...] = out.astype(o_ref.dtype)


def mlp_forward(x, params, *, tm=512, compute_dtype=jnp.float32):
    """x: (N, 1) float32.  params: PyTorch-layout [(W(out,in), b(out,)), ...].

    Returns (N, 1) float32. The batch is padded to a multiple of the lane tile
    `tm`; padded lanes are computed on zeros and sliced off.
    """
    n = x.shape[0]

    # Tile selection: don't exceed the (128-padded) batch; keep >= 2 parallel
    # grid steps when the batch allows it (v7x has 2 TensorCores). The tile is
    # bounded by vreg pressure (32*tm f32 activations), not VMEM — tm in
    # [512, 1024] is the sweet spot for realistic PINN collocation batches.
    n128 = ((n + 127) // 128) * 128
    if n128 >= 256:
        tm = max(128, min(tm, (n128 // 256) * 128))
    else:
        tm = 128
    n_pad = ((n + tm - 1) // tm) * tm

    # Lane-dense layout: (1, N_pad) with batch on the lane axis.
    xt = jnp.pad(x.reshape(1, n), ((0, 0), (0, n_pad - n)))

    (w1, b1), (w2, b2), (w3, b3), (w4, b4), (w5, b5) = params

    def lane_full(b):
        # Pre-broadcast biases to lane-full (out, tm) tiles so the in-kernel
        # adds read whole vregs (no per-step lane broadcast of a column).
        return jnp.broadcast_to(
            b.reshape(-1, 1).astype(jnp.float32), (b.shape[0], tm))

    b1t, b2t, b3t, b4t, b5t = (lane_full(b) for b in (b1, b2, b3, b4, b5))

    def resident(arr):
        # Whole (tiny) weight/bias as a single resident block at every step.
        nd = arr.ndim
        return pl.BlockSpec(arr.shape, lambda i: (0,) * nd)

    in_specs = [
        pl.BlockSpec((1, tm), lambda i: (0, i)),      # x tile over batch (lanes)
        resident(w1), resident(b1t),
        resident(w2), resident(b2t),
        resident(w3), resident(b3t),
        resident(w4), resident(b4t),
        resident(w5), resident(b5t),
    ]

    kernel = functools.partial(mlp_kernel, compute_dtype=compute_dtype)

    out = pl.pallas_call(
        kernel,
        out_shape=jax.ShapeDtypeStruct((1, n_pad), jnp.float32),
        grid=(n_pad // tm,),
        in_specs=in_specs,
        out_specs=pl.BlockSpec((1, tm), lambda i: (0, i)),
        compiler_params=pltpu.CompilerParams(
            dimension_semantics=("parallel",)),
    )(xt, w1, b1t, w2, b2t, w3, b3t, w4, b4t, w5, b5t)

    return out[0, :n].reshape(n, 1)


def init_params(key):
    """PyTorch-style parameters: W is (out_features, in_features), b is (out_features,)."""
    dims = [(1, HIDDEN), (HIDDEN, HIDDEN), (HIDDEN, HIDDEN),
            (HIDDEN, HIDDEN), (HIDDEN, 1)]
    params = []
    for i, (fan_in, fan_out) in enumerate(dims):
        kw, kb = jax.random.split(jax.random.fold_in(key, i))
        bound = 1.0 / (fan_in ** 0.5)   # PyTorch default uniform(-1/sqrt(fan_in), ...)
        w = jax.random.uniform(kw, (fan_out, fan_in), jnp.float32, -bound, bound)
        b = jax.random.uniform(kb, (fan_out,), jnp.float32, -bound, bound)
        params.append((w, b))
    return params


def reference_forward(x, params):
    h = x
    for i, (w, b) in enumerate(params):
        h = h @ w.T + b
        if i < len(params) - 1:
            h = jnp.tanh(h)
    return h


if __name__ == "__main__":
    key = jax.random.PRNGKey(0)
    params = init_params(key)

    # 1024 collocation points: with tm=512 the grid has 2 lane-dense parallel
    # tiles (both v7x TensorCores active, per-step overhead amortized).
    n = 1024
    x = jax.random.uniform(jax.random.fold_in(key, 100), (n, 1),
                           jnp.float32, -1.0, 1.0)

    out = mlp_forward(x, params)          # tm=512, f32 tanh (exact vs reference)
    out = jax.block_until_ready(out)

    ref = reference_forward(x, params)
    assert out.shape == (n, 1)
    assert jnp.allclose(out, ref, atol=1e-5, rtol=1e-5), "mismatch vs reference"

    print("KERNEL_OK")
</pallas_src>

<mosaic_0001>
module attributes {stable_mosaic.version = 11 : i64} {
  func.func @mlp_kernel(%arg0: i32, %arg1: memref<1x512xf32, #tpu.memory_space<vmem>>, %arg2: memref<32x1xf32, #tpu.memory_space<vmem>>, %arg3: memref<32x512xf32, #tpu.memory_space<vmem>>, %arg4: memref<32x32xf32, #tpu.memory_space<vmem>>, %arg5: memref<32x512xf32, #tpu.memory_space<vmem>>, %arg6: memref<32x32xf32, #tpu.memory_space<vmem>>, %arg7: memref<32x512xf32, #tpu.memory_space<vmem>>, %arg8: memref<32x32xf32, #tpu.memory_space<vmem>>, %arg9: memref<32x512xf32, #tpu.memory_space<vmem>>, %arg10: memref<1x32xf32, #tpu.memory_space<vmem>>, %arg11: memref<1x512xf32, #tpu.memory_space<vmem>>, %arg12: memref<1x512xf32, #tpu.memory_space<vmem>>) attributes {dimension_semantics = [#tpu.dimension_semantics<parallel>], iteration_bounds = array<i64: 2>, scalar_prefetch = 0 : i64, scratch_operands = 0 : i64, tpu.core_type = #tpu.core_type<tc>, window_params = [{transform_indices = @transform_0, window_bounds = array<i64: 1, 512>}, {pipeline_mode = #tpu.pipeline_mode<synchronous>, transform_indices = @transform_1, window_bounds = array<i64: 32, 1>}, {pipeline_mode = #tpu.pipeline_mode<synchronous>, transform_indices = @transform_2, window_bounds = array<i64: 32, 512>}, {pipeline_mode = #tpu.pipeline_mode<synchronous>, transform_indices = @transform_3, window_bounds = array<i64: 32, 32>}, {pipeline_mode = #tpu.pipeline_mode<synchronous>, transform_indices = @transform_4, window_bounds = array<i64: 32, 512>}, {pipeline_mode = #tpu.pipeline_mode<synchronous>, transform_indices = @transform_5, window_bounds = array<i64: 32, 32>}, {pipeline_mode = #tpu.pipeline_mode<synchronous>, transform_indices = @transform_6, window_bounds = array<i64: 32, 512>}, {pipeline_mode = #tpu.pipeline_mode<synchronous>, transform_indices = @transform_7, window_bounds = array<i64: 32, 32>}, {pipeline_mode = #tpu.pipeline_mode<synchronous>, transform_indices = @transform_8, window_bounds = array<i64: 32, 512>}, {pipeline_mode = #tpu.pipeline_mode<synchronous>, transform_indices = @transform_9, window_bounds = array<i64: 1, 32>}, {pipeline_mode = #tpu.pipeline_mode<synchronous>, transform_indices = @transform_10, window_bounds = array<i64: 1, 512>}, {transform_indices = @transform_11, window_bounds = array<i64: 1, 512>}]} {
    %c0 = arith.constant 0 : index
    %c0_0 = arith.constant 0 : index
    %0 = vector.load %arg1[%c0, %c0_0] : memref<1x512xf32, #tpu.memory_space<vmem>>, vector<1x512xf32>
    %c0_1 = arith.constant 0 : index
    %c0_2 = arith.constant 0 : index
    %1 = vector.load %arg2[%c0_1, %c0_2] : memref<32x1xf32, #tpu.memory_space<vmem>>, vector<32x1xf32>
    %2 = vector.broadcast %1 : vector<32x1xf32> to vector<32x512xf32>
    %3 = vector.broadcast %0 : vector<1x512xf32> to vector<32x512xf32>
    %4 = arith.mulf %2, %3 : vector<32x512xf32>
    %c0_3 = arith.constant 0 : index
    %c0_4 = arith.constant 0 : index
    %5 = vector.load %arg3[%c0_3, %c0_4] : memref<32x512xf32, #tpu.memory_space<vmem>>, vector<32x512xf32>
    %6 = arith.addf %4, %5 : vector<32x512xf32>
    %7 = math.tanh %6 : vector<32x512xf32>
    %c0_5 = arith.constant 0 : index
    %c0_6 = arith.constant 0 : index
    %8 = vector.load %arg4[%c0_5, %c0_6] : memref<32x32xf32, #tpu.memory_space<vmem>>, vector<32x32xf32>
    %cst = arith.constant dense<0.000000e+00> : vector<32x512xf32>
    %9 = tpu.matmul %8, %7, %cst {dimension_numbers = #tpu.dot_dimension_numbers<[1], [0], [0], [1], [0, 0, 1, 1], [], []>} : vector<32x32xf32>, vector<32x512xf32>, vector<32x512xf32> -> vector<32x512xf32>
    %c0_7 = arith.constant 0 : index
    %c0_8 = arith.constant 0 : index
    %10 = vector.load %arg5[%c0_7, %c0_8] : memref<32x512xf32, #tpu.memory_space<vmem>>, vector<32x512xf32>
    %11 = arith.addf %9, %10 : vector<32x512xf32>
    %12 = math.tanh %11 : vector<32x512xf32>
    %c0_9 = arith.constant 0 : index
    %c0_10 = arith.constant 0 : index
    %13 = vector.load %arg6[%c0_9, %c0_10] : memref<32x32xf32, #tpu.memory_space<vmem>>, vector<32x32xf32>
    %cst_11 = arith.constant dense<0.000000e+00> : vector<32x512xf32>
    %14 = tpu.matmul %13, %12, %cst_11 {dimension_numbers = #tpu.dot_dimension_numbers<[1], [0], [0], [1], [0, 0, 1, 1], [], []>} : vector<32x32xf32>, vector<32x512xf32>, vector<32x512xf32> -> vector<32x512xf32>
    %c0_12 = arith.constant 0 : index
    %c0_13 = arith.constant 0 : index
    %15 = vector.load %arg7[%c0_12, %c0_13] : memref<32x512xf32, #tpu.memory_space<vmem>>, vector<32x512xf32>
    %16 = arith.addf %14, %15 : vector<32x512xf32>
    %17 = math.tanh %16 : vector<32x512xf32>
    %c0_14 = arith.constant 0 : index
    %c0_15 = arith.constant 0 : index
    %18 = vector.load %arg8[%c0_14, %c0_15] : memref<32x32xf32, #tpu.memory_space<vmem>>, vector<32x32xf32>
    %cst_16 = arith.constant dense<0.000000e+00> : vector<32x512xf32>
    %19 = tpu.matmul %18, %17, %cst_16 {dimension_numbers = #tpu.dot_dimension_numbers<[1], [0], [0], [1], [0, 0, 1, 1], [], []>} : vector<32x32xf32>, vector<32x512xf32>, vector<32x512xf32> -> vector<32x512xf32>
    %c0_17 = arith.constant 0 : index
    %c0_18 = arith.constant 0 : index
    %20 = vector.load %arg9[%c0_17, %c0_18] : memref<32x512xf32, #tpu.memory_space<vmem>>, vector<32x512xf32>
    %21 = arith.addf %19, %20 : vector<32x512xf32>
    %22 = math.tanh %21 : vector<32x512xf32>
    %c0_19 = arith.constant 0 : index
    %c0_20 = arith.constant 0 : index
    %23 = vector.load %arg10[%c0_19, %c0_20] : memref<1x32xf32, #tpu.memory_space<vmem>>, vector<1x32xf32>
    %cst_21 = arith.constant dense<0.000000e+00> : vector<1x512xf32>
    %24 = tpu.matmul %23, %22, %cst_21 {dimension_numbers = #tpu.dot_dimension_numbers<[1], [0], [0], [1], [0, 0, 1, 1], [], []>} : vector<1x32xf32>, vector<32x512xf32>, vector<1x512xf32> -> vector<1x512xf32>
    %c0_22 = arith.constant 0 : index
    %c0_23 = arith.constant 0 : index
    %25 = vector.load %arg11[%c0_22, %c0_23] : memref<1x512xf32, #tpu.memory_space<vmem>>, vector<1x512xf32>
    %26 = arith.addf %24, %25 : vector<1x512xf32>
    %c0_24 = arith.constant 0 : index
    %c0_25 = arith.constant 0 : index
    %27 = vector.load %arg12[%c0_24, %c0_25] : memref<1x512xf32, #tpu.memory_space<vmem>>, vector<1x512xf32>
    tpu.vector_store %arg12[%c0_24, %c0_25], %26 {strides = array<i32>} : memref<1x512xf32, #tpu.memory_space<vmem>>, vector<1x512xf32>,
    return
  }
  func.func @transform_0(%arg0: i32) -> (i32, i32) {
    %c0_i32 = arith.constant 0 : i32
    %c0_i32_0 = arith.constant 0 : i32
    return %c0_i32, %arg0 : i32, i32
  }
  func.func @transform_1(%arg0: i32) -> (i32, i32) {
    %c0_i32 = arith.constant 0 : i32
    %c0_i32_0 = arith.constant 0 : i32
    %c0_i32_1 = arith.constant 0 : i32
    return %c0_i32, %c0_i32_0 : i32, i32
  }
  func.func @transform_2(%arg0: i32) -> (i32, i32) {
    %c0_i32 = arith.constant 0 : i32
    %c0_i32_0 = arith.constant 0 : i32
    %c0_i32_1 = arith.constant 0 : i32
    return %c0_i32, %c0_i32_0 : i32, i32
  }
  func.func @transform_3(%arg0: i32) -> (i32, i32) {
    %c0_i32 = arith.constant 0 : i32
    %c0_i32_0 = arith.constant 0 : i32
    %c0_i32_1 = arith.constant 0 : i32
    return %c0_i32, %c0_i32_0 : i32, i32
  }
  func.func @transform_4(%arg0: i32) -> (i32, i32) {
    %c0_i32 = arith.constant 0 : i32
    %c0_i32_0 = arith.constant 0 : i32
    %c0_i32_1 = arith.constant 0 : i32
    return %c0_i32, %c0_i32_0 : i32, i32
  }
  func.func @transform_5(%arg0: i32) -> (i32, i32) {
    %c0_i32 = arith.constant 0 : i32
    %c0_i32_0 = arith.constant 0 : i32
    %c0_i32_1 = arith.constant 0 : i32
    return %c0_i32, %c0_i32_0 : i32, i32
  }
  func.func @transform_6(%arg0: i32) -> (i32, i32) {
    %c0_i32 = arith.constant 0 : i32
    %c0_i32_0 = arith.constant 0 : i32
    %c0_i32_1 = arith.constant 0 : i32
    return %c0_i32, %c0_i32_0 : i32, i32
  }
  func.func @transform_7(%arg0: i32) -> (i32, i32) {
    %c0_i32 = arith.constant 0 : i32
    %c0_i32_0 = arith.constant 0 : i32
    %c0_i32_1 = arith.constant 0 : i32
    return %c0_i32, %c0_i32_0 : i32, i32
  }
  func.func @transform_8(%arg0: i32) -> (i32, i32) {
    %c0_i32 = arith.constant 0 : i32
    %c0_i32_0 = arith.constant 0 : i32
    %c0_i32_1 = arith.constant 0 : i32
    return %c0_i32, %c0_i32_0 : i32, i32
  }
  func.func @transform_9(%arg0: i32) -> (i32, i32) {
    %c0_i32 = arith.constant 0 : i32
    %c0_i32_0 = arith.constant 0 : i32
    %c0_i32_1 = arith.constant 0 : i32
    return %c0_i32, %c0_i32_0 : i32, i32
  }
  func.func @transform_10(%arg0: i32) -> (i32, i32) {
    %c0_i32 = arith.constant 0 : i32
    %c0_i32_0 = arith.constant 0 : i32
    %c0_i32_1 = arith.constant 0 : i32
    return %c0_i32, %c0_i32_0 : i32, i32
  }
  func.func @transform_11(%arg0: i32) -> (i32, i32) {
    %c0_i32 = arith.constant 0 : i32
    %c0_i32_0 = arith.constant 0 : i32
    return %c0_i32, %arg0 : i32, i32
  }
}

</mosaic_0001>

<llo_original>
// kernel: tpu_custom_call.1
$region0: #{tpu_custom_call.1}
  #allocation0 [shape = 'u32[]', space=smem, size = 0x4, offset = 0x4, fixed_abs, tag = 'smem constant byte address 0x4 - core index']
  #allocation1 [shape = 'u32[144,128]{1,0:T(1,128)}', space=vmem, size = 0x12000, scoped, tag = 'internal scratch']
  %s0 = inlined_call_operand.vmem [shape: f32[1,1024], index: 0, kind: input, shape index: {}]
  %s1 = inlined_call_operand.vmem [shape: f32[32,1], index: 1, kind: input, shape index: {}]
  %s2 = inlined_call_operand.hbm [shape: f32[32,512], index: 2, kind: input, shape index: {}]
  %s3 = inlined_call_operand.vmem [shape: f32[32,32], index: 3, kind: input, shape index: {}]
  %s4 = inlined_call_operand.hbm [shape: f32[32,512], index: 4, kind: input, shape index: {}]
  %s5 = inlined_call_operand.hbm [shape: f32[32,32], index: 5, kind: input, shape index: {}]
  %s6 = inlined_call_operand.hbm [shape: f32[32,512], index: 6, kind: input, shape index: {}]
  %s7 = inlined_call_operand.hbm [shape: f32[32,32], index: 7, kind: input, shape index: {}]
  %s8 = inlined_call_operand.hbm [shape: f32[32,512], index: 8, kind: input, shape index: {}]
  %s9 = inlined_call_operand.vmem [shape: f32[1,32], index: 9, kind: input, shape index: {}]
  %s10 = inlined_call_operand.vmem [shape: f32[1,512], index: 10, kind: input, shape index: {}]
  %s11 = inlined_call_operand.hbm [shape: f32[1,1024], index: 11, kind: output, shape index: {}]
  %s12 = sld [smem:[#allocation0]]
  $region101: #{tpu_custom_call.1} parent=0
    _
  %s14 = ssub.s32 1, %s12
  %s15 = scalar_select 0, %s14, %s12
  $region1: #{tpu_custom_call.1} parent=0
    #allocation2 [shape = 'u8[65536]{0}', space=vmem, size = 0x10000, scoped, tag = 'input window, operand 2, single buffered']
    #allocation3 [shape = 's32[2]{0}', space=sflag, size = 0x8, scoped, tag = 'scoped memory for tpu_custom_call.1']
    #allocation4 [shape = 's32[2]{0}', space=sflag, size = 0x8, scoped, tag = 'scoped memory for tpu_custom_call.1']
    #allocation5 [shape = 'u8[65536]{0}', space=vmem, size = 0x10000, scoped, tag = 'input window, operand 4, single buffered']
    #allocation6 [shape = 's32[1]{0}', space=sflag, size = 0x4, scoped, tag = 'scoped memory for tpu_custom_call.1']
    #allocation7 [shape = 'u8[16384]{0}', space=vmem, size = 0x4000, scoped, tag = 'input window, operand 5, single buffered']
    #allocation8 [shape = 'u8[65536]{0}', space=vmem, size = 0x10000, scoped, tag = 'input window, operand 6, single buffered']
    #allocation9 [shape = 's32[1]{0}', space=sflag, size = 0x4, scoped, tag = 'scoped memory for tpu_custom_call.1']
    #allocation10 [shape = 'u8[16384]{0}', space=vmem, size = 0x4000, scoped, tag = 'input window, operand 7, single buffered']
    #allocation11 [shape = 'u8[65536]{0}', space=vmem, size = 0x10000, scoped, tag = 'input window, operand 8, single buffered']
    #allocation12 [shape = 's32[1]{0}', space=sflag, size = 0x4, scoped, tag = 'scoped memory for tpu_custom_call.1']
    #allocation13 [shape = 'u8[4096]{0}', space=vmem, size = 0x1000, scoped, tag = 'output window, operand 0']
    %16 = vsyncpa [#allocation3], 0
    %17 = vsyncpa [#allocation6], 0
    %18 = vsyncpa [#allocation9], 0
    %19 = vsyncpa [#allocation12], 0
    %20 = vsyncpa [#allocation4], 0
    %s21 = scalar_lea.sflag [#allocation4], 1
    %22 = vsyncpa %s21, 0
    loop: start=0, step=1, limit=4
    $region2: #{tpu_custom_call.1} parent=1 // loop_pre_header
      _
    $region3: #{tpu_custom_call.1} parent=1 // loop_header
      %s24 = sphi 0, %s28
      %p25 = scmp.ge.s32.totalorder %s24, 4
      %s34 = sphi 0, %s36
      %s37 = sphi 0, %s34
      %s38 = sphi 0, %s37
      %s54 = sphi 0, %s38
      %s58 = sphi 0, %s58
      %s60 = sphi 0, %s58
      %s61 = sphi 0, %s60
      %s75 = sphi 0, %s61
      %s79 = sphi 0, %s79
      %s81 = sphi 0, %s79
      %s82 = sphi 0, %s81
      %s96 = sphi 0, %s82
      %s100 = sphi 0, %s100
      %s102 = sphi 0, %s100
      %s103 = sphi 0, %s102
      %s117 = sphi 0, %s103
      %s121 = sphi 0, %s121
      %s123 = sphi 0, %s121
      %s124 = sphi 0, %s123
      %s138 = sphi 0, %s124
      %s142 = sphi 0, %s142
      %s144 = sphi 0, %s142
      %s145 = sphi 0, %s144
      %s159 = sphi 0, %s145
      %s163 = sphi 0, %s163
      %s165 = sphi 0, %s163
      %s166 = sphi 0, %s165
      %s180 = sphi 0, %s166
      %s184 = sphi 0, %s184
      %s186 = sphi 0, %s184
      %s187 = sphi 0, %s186
      %s201 = sphi 0, %s187
      %s205 = sphi 0, %s205
      %s207 = sphi 0, %s205
      %s208 = sphi 0, %s207
      %s222 = sphi 0, %s208
      %s226 = sphi 0, %s226
      %s228 = sphi 0, %s226
      %s229 = sphi 0, %s228
      %s243 = sphi 0, %s229
      %s247 = sphi 0, %s247
      %s249 = sphi 0, %s247
      %s250 = sphi 0, %s249
      %s264 = sphi 0, %s250
      %s270 = sphi 0, %s272
      %s273 = sphi 0, %s270
      %s274 = sphi 0, %s273
      %s290 = sphi 0, %s274
    $region4: #{tpu_custom_call.1} parent=1 // loop_header_branch
      %27 = sbr.rel (%p25) target = $region8
    $region5: #{tpu_custom_call.1} parent=1 // loop_body
      %s29 = ssub.s32 %s24, 1
      %s30 = ssub.s32 %s24, 2
      %s31 = sadd.s32 %s24, 1
      %s32 = ssub.s32 %s24, %s31
      %p33 = scmp.eq.s32.totalorder %s32, 0
      %s35 = sadd.s32 %s34, 1
      %s36 = scalar_select %p33, %s34, %s35
      %p39 = pneg %p33
      %p40 = scmp.eq.s32.totalorder %s24, 1
      %p41 = por %p39, %p40
      %p42 = scmp.ne.s32.totalorder %s34, %s37
      %p43 = scmp.eq.s32.totalorder %s24, 0
      %p44 = por %p42, %p43
      %p45 = scmp.ne.s32.totalorder %s34, %s37
      %p46 = scmp.eq.s32.totalorder %s29, 1
      %p47 = por %p45, %p46
      %p48 = scmp.ne.s32.totalorder %s37, %s38
      %p49 = scmp.eq.s32.totalorder %s29, 0
      %p50 = por %p48, %p49
      %p51 = scmp.ne.s32.totalorder %s37, %s38
      %p52 = scmp.eq.s32.totalorder %s30, 1
      %p53 = por %p51, %p52
      %p55 = scmp.ne.s32.totalorder %s38, %s54
      %p56 = scmp.eq.s32.totalorder %s30, 0
      %p57 = por %p55, %p56
      %s59 = sadd.s32 %s58, 1
      %p62 = scmp.eq.s32.totalorder %s24, 1
      %p63 = scmp.ne.s32.totalorder %s58, %s60
      %p64 = scmp.eq.s32.totalorder %s24, 0
      %p65 = por %p63, %p64
      %p66 = scmp.ne.s32.totalorder %s58, %s60
      %p67 = scmp.eq.s32.totalorder %s29, 1
      %p68 = por %p66, %p67
      %p69 = scmp.ne.s32.totalorder %s60, %s61
      %p70 = scmp.eq.s32.totalorder %s29, 0
      %p71 = por %p69, %p70
      %p72 = scmp.ne.s32.totalorder %s60, %s61
      %p73 = scmp.eq.s32.totalorder %s30, 1
      %p74 = por %p72, %p73
      %p76 = scmp.ne.s32.totalorder %s61, %s75
      %p77 = scmp.eq.s32.totalorder %s30, 0
      %p78 = por %p76, %p77
      %s80 = sadd.s32 %s79, 1
      %p83 = scmp.eq.s32.totalorder %s24, 1
      %p84 = scmp.ne.s32.totalorder %s79, %s81
      %p85 = scmp.eq.s32.totalorder %s24, 0
      %p86 = por %p84, %p85
      %p87 = scmp.ne.s32.totalorder %s79, %s81
      %p88 = scmp.eq.s32.totalorder %s29, 1
      %p89 = por %p87, %p88
      %p90 = scmp.ne.s32.totalorder %s81, %s82
      %p91 = scmp.eq.s32.totalorder %s29, 0
      %p92 = por %p90, %p91
      %p93 = scmp.ne.s32.totalorder %s81, %s82
      %p94 = scmp.eq.s32.totalorder %s30, 1
      %p95 = por %p93, %p94
      %p97 = scmp.ne.s32.totalorder %s82, %s96
      %p98 = scmp.eq.s32.totalorder %s30, 0
      %p99 = por %p97, %p98
      %s101 = sadd.s32 %s100, 1
      %p104 = scmp.eq.s32.totalorder %s24, 1
      %p105 = scmp.ne.s32.totalorder %s100, %s102
      %p106 = scmp.eq.s32.totalorder %s24, 0
      %p107 = por %p105, %p106
      %p108 = scmp.ne.s32.totalorder %s100, %s102
      %p109 = scmp.eq.s32.totalorder %s29, 1
      %p110 = por %p108, %p109
      %p111 = scmp.ne.s32.totalorder %s102, %s103
      %p112 = scmp.eq.s32.totalorder %s29, 0
      %p113 = por %p111, %p112
      %p114 = scmp.ne.s32.totalorder %s102, %s103
      %p115 = scmp.eq.s32.totalorder %s30, 1
      %p116 = por %p114, %p115
      %p118 = scmp.ne.s32.totalorder %s103, %s117
      %p119 = scmp.eq.s32.totalorder %s30, 0
      %p120 = por %p118, %p119
      %s122 = sadd.s32 %s121, 1
      %p125 = scmp.eq.s32.totalorder %s24, 1
      %p126 = scmp.ne.s32.totalorder %s121, %s123
      %p127 = scmp.eq.s32.totalorder %s24, 0
      %p128 = por %p126, %p127
      %p129 = scmp.ne.s32.totalorder %s121, %s123
      %p130 = scmp.eq.s32.totalorder %s29, 1
      %p131 = por %p129, %p130
      %p132 = scmp.ne.s32.totalorder %s123, %s124
      %p133 = scmp.eq.s32.totalorder %s29, 0
      %p134 = por %p132, %p133
      %p135 = scmp.ne.s32.totalorder %s123, %s124
      %p136 = scmp.eq.s32.totalorder %s30, 1
      %p137 = por %p135, %p136
      %p139 = scmp.ne.s32.totalorder %s124, %s138
      %p140 = scmp.eq.s32.totalorder %s30, 0
      %p141 = por %p139, %p140
      %s143 = sadd.s32 %s142, 1
      %p146 = scmp.eq.s32.totalorder %s24, 1
      %p147 = scmp.ne.s32.totalorder %s142, %s144
      %p148 = scmp.eq.s32.totalorder %s24, 0
      %p149 = por %p147, %p148
      %p150 = scmp.ne.s32.totalorder %s142, %s144
      %p151 = scmp.eq.s32.totalorder %s29, 1
      %p152 = por %p150, %p151
      %p153 = scmp.ne.s32.totalorder %s144, %s145
      %p154 = scmp.eq.s32.totalorder %s29, 0
      %p155 = por %p153, %p154
      %p156 = scmp.ne.s32.totalorder %s144, %s145
      %p157 = scmp.eq.s32.totalorder %s30, 1
      %p158 = por %p156, %p157
      %p160 = scmp.ne.s32.totalorder %s145, %s159
      %p161 = scmp.eq.s32.totalorder %s30, 0
      %p162 = por %p160, %p161
      %s164 = sadd.s32 %s163, 1
      %p167 = scmp.eq.s32.totalorder %s24, 1
      %p168 = scmp.ne.s32.totalorder %s163, %s165
      %p169 = scmp.eq.s32.totalorder %s24, 0
      %p170 = por %p168, %p169
      %p171 = scmp.ne.s32.totalorder %s163, %s165
      %p172 = scmp.eq.s32.totalorder %s29, 1
      %p173 = por %p171, %p172
      %p174 = scmp.ne.s32.totalorder %s165, %s166
      %p175 = scmp.eq.s32.totalorder %s29, 0
      %p176 = por %p174, %p175
      %p177 = scmp.ne.s32.totalorder %s165, %s166
      %p178 = scmp.eq.s32.totalorder %s30, 1
      %p179 = por %p177, %p178
      %p181 = scmp.ne.s32.totalorder %s166, %s180
      %p182 = scmp.eq.s32.totalorder %s30, 0
      %p183 = por %p181, %p182
      %s185 = sadd.s32 %s184, 1
      %p188 = scmp.eq.s32.totalorder %s24, 1
      %p189 = scmp.ne.s32.totalorder %s184, %s186
      %p190 = scmp.eq.s32.totalorder %s24, 0
      %p191 = por %p189, %p190
      %p192 = scmp.ne.s32.totalorder %s184, %s186
      %p193 = scmp.eq.s32.totalorder %s29, 1
      %p194 = por %p192, %p193
      %p195 = scmp.ne.s32.totalorder %s186, %s187
      %p196 = scmp.eq.s32.totalorder %s29, 0
      %p197 = por %p195, %p196
      %p198 = scmp.ne.s32.totalorder %s186, %s187
      %p199 = scmp.eq.s32.totalorder %s30, 1
      %p200 = por %p198, %p199
      %p202 = scmp.ne.s32.totalorder %s187, %s201
      %p203 = scmp.eq.s32.totalorder %s30, 0
      %p204 = por %p202, %p203
      %s206 = sadd.s32 %s205, 1
      %p209 = scmp.eq.s32.totalorder %s24, 1
      %p210 = scmp.ne.s32.totalorder %s205, %s207
      %p211 = scmp.eq.s32.totalorder %s24, 0
      %p212 = por %p210, %p211
      %p213 = scmp.ne.s32.totalorder %s205, %s207
      %p214 = scmp.eq.s32.totalorder %s29, 1
      %p215 = por %p213, %p214
      %p216 = scmp.ne.s32.totalorder %s207, %s208
      %p217 = scmp.eq.s32.totalorder %s29, 0
      %p218 = por %p216, %p217
      %p219 = scmp.ne.s32.totalorder %s207, %s208
      %p220 = scmp.eq.s32.totalorder %s30, 1
      %p221 = por %p219, %p220
      %p223 = scmp.ne.s32.totalorder %s208, %s222
      %p224 = scmp.eq.s32.totalorder %s30, 0
      %p225 = por %p223, %p224
      %s227 = sadd.s32 %s226, 1
      %p230 = scmp.eq.s32.totalorder %s24, 1
      %p231 = scmp.ne.s32.totalorder %s226, %s228
      %p232 = scmp.eq.s32.totalorder %s24, 0
      %p233 = por %p231, %p232
      %p234 = scmp.ne.s32.totalorder %s226, %s228
      %p235 = scmp.eq.s32.totalorder %s29, 1
      %p236 = por %p234, %p235
      %p237 = scmp.ne.s32.totalorder %s228, %s229
      %p238 = scmp.eq.s32.totalorder %s29, 0
      %p239 = por %p237, %p238
      %p240 = scmp.ne.s32.totalorder %s228, %s229
      %p241 = scmp.eq.s32.totalorder %s30, 1
      %p242 = por %p240, %p241
      %p244 = scmp.ne.s32.totalorder %s229, %s243
      %p245 = scmp.eq.s32.totalorder %s30, 0
      %p246 = por %p244, %p245
      %s248 = sadd.s32 %s247, 1
      %p251 = scmp.eq.s32.totalorder %s24, 1
      %p252 = scmp.ne.s32.totalorder %s247, %s249
      %p253 = scmp.eq.s32.totalorder %s24, 0
      %p254 = por %p252, %p253
      %p255 = scmp.ne.s32.totalorder %s247, %s249
      %p256 = scmp.eq.s32.totalorder %s29, 1
      %p257 = por %p255, %p256
      %p258 = scmp.ne.s32.totalorder %s249, %s250
      %p259 = scmp.eq.s32.totalorder %s29, 0
      %p260 = por %p258, %p259
      %p261 = scmp.ne.s32.totalorder %s249, %s250
      %p262 = scmp.eq.s32.totalorder %s30, 1
      %p263 = por %p261, %p262
      %p265 = scmp.ne.s32.totalorder %s250, %s264
      %p266 = scmp.eq.s32.totalorder %s30, 0
      %p267 = por %p265, %p266
      %s268 = ssub.s32 %s24, %s31
      %p269 = scmp.eq.s32.totalorder %s268, 0
      %s271 = sadd.s32 %s270, 1
      %s272 = scalar_select %p269, %s270, %s271
      %p275 = pneg %p269
      %p276 = scmp.eq.s32.totalorder %s24, 1
      %p277 = por %p275, %p276
      %p278 = scmp.ne.s32.totalorder %s270, %s273
      %p279 = scmp.eq.s32.totalorder %s24, 0
      %p280 = por %p278, %p279
      %p281 = scmp.ne.s32.totalorder %s270, %s273
      %p282 = scmp.eq.s32.totalorder %s29, 1
      %p283 = por %p281, %p282
      %p284 = scmp.ne.s32.totalorder %s273, %s274
      %p285 = scmp.eq.s32.totalorder %s29, 0
      %p286 = por %p284, %p285
      %p287 = scmp.ne.s32.totalorder %s273, %s274
      %p288 = scmp.eq.s32.totalorder %s30, 1
      %p289 = por %p287, %p288
      %p291 = scmp.ne.s32.totalorder %s274, %s290
      %p292 = scmp.eq.s32.totalorder %s30, 0
      %p293 = por %p291, %p292
      %p294 = scmp.le.s32.totalorder 1, %s24
      %p295 = scmp.lt.s32.totalorder %s24, 3
      %p296 = pnand %p294, %p295
      %p297 = pneg %p296
      // Predicated region
      $region9: #{tpu_custom_call.1} parent=5 // pred_check
        _
      $region10: #{tpu_custom_call.1} parent=5 // pred_check_branch
        %299 = sbr.rel (%p296) target = $region12
      $region11: #{tpu_custom_call.1} parent=5 // pred_region
        %s300 = ssub.s32 %s24, 1
        // Predicated region
        $region13: #{tpu_custom_call.1} parent=11 // pred_check
          %p301 = pneg %p71
        $region14: #{tpu_custom_call.1} parent=11 // pred_check_branch
          %303 = sbr.rel (%p301) target = $region16
        $region15: #{tpu_custom_call.1} parent=11 // pred_region
          _
        $region16: #{tpu_custom_call.1} parent=11 // pred_fallthru
          _
        // Predicated region
        $region17: #{tpu_custom_call.1} parent=11 // pred_check
          %p304 = pneg %p92
        $region18: #{tpu_custom_call.1} parent=11 // pred_check_branch
          %306 = sbr.rel (%p304) target = $region20
        $region19: #{tpu_custom_call.1} parent=11 // pred_region
          %s308 = ssub.s32 2048, 2048
          %309 = vsyncadd [#allocation3], %s308
          %s310 = sshll.u32 [#allocation2], 4
          %s311 = int_to_ptr.vmem [resolvable:$true] %s310
          %316 = dma.hbm_to_vmem [thread:$0]  %s2, 2048, %s311, [#allocation3], 512, 512, 32
        $region20: #{tpu_custom_call.1} parent=11 // pred_fallthru
          _
        // Predicated region
        $region21: #{tpu_custom_call.1} parent=11 // pred_check
          %p317 = pneg %p113
        $region22: #{tpu_custom_call.1} parent=11 // pred_check_branch
          %319 = sbr.rel (%p317) target = $region24
        $region23: #{tpu_custom_call.1} parent=11 // pred_region
          _
        $region24: #{tpu_custom_call.1} parent=11 // pred_fallthru
          _
        // Predicated region
        $region25: #{tpu_custom_call.1} parent=11 // pred_check
          %p320 = pneg %p134
        $region26: #{tpu_custom_call.1} parent=11 // pred_check_branch
          %322 = sbr.rel (%p320) target = $region28
        $region27: #{tpu_custom_call.1} parent=11 // pred_region
          %s324 = ssub.s32 2048, 2048
          %325 = vsyncadd [#allocation6], %s324
          %s326 = sshll.u32 [#allocation5], 4
          %s327 = int_to_ptr.vmem [resolvable:$true] %s326
          %332 = dma.hbm_to_vmem [thread:$0]  %s4, 2048, %s327, [#allocation6], 512, 512, 32
        $region28: #{tpu_custom_call.1} parent=11 // pred_fallthru
          _
        // Predicated region
        $region29: #{tpu_custom_call.1} parent=11 // pred_check
          %p333 = pneg %p155
        $region30: #{tpu_custom_call.1} parent=11 // pred_check_branch
          %335 = sbr.rel (%p333) target = $region32
        $region31: #{tpu_custom_call.1} parent=11 // pred_region
          %s337 = ssub.s32 512, 512
          %338 = vsyncadd [#allocation6], %s337
          %s339 = sshll.u32 [#allocation7], 4
          %s340 = int_to_ptr.vmem [resolvable:$true] %s339
          %345 = dma.hbm_to_vmem [thread:$0]  %s5, 512, %s340, [#allocation6], 128, 128, 8
        $region32: #{tpu_custom_call.1} parent=11 // pred_fallthru
          _
        // Predicated region
        $region33: #{tpu_custom_call.1} parent=11 // pred_check
          %p346 = pneg %p176
        $region34: #{tpu_custom_call.1} parent=11 // pred_check_branch
          %348 = sbr.rel (%p346) target = $region36
        $region35: #{tpu_custom_call.1} parent=11 // pred_region
          %s350 = ssub.s32 2048, 2048
          %351 = vsyncadd [#allocation9], %s350
          %s352 = sshll.u32 [#allocation8], 4
          %s353 = int_to_ptr.vmem [resolvable:$true] %s352
          %358 = dma.hbm_to_vmem [thread:$0]  %s6, 2048, %s353, [#allocation9], 512, 512, 32
        $region36: #{tpu_custom_call.1} parent=11 // pred_fallthru
          _
        // Predicated region
        $region37: #{tpu_custom_call.1} parent=11 // pred_check
          %p359 = pneg %p197
        $region38: #{tpu_custom_call.1} parent=11 // pred_check_branch
          %361 = sbr.rel (%p359) target = $region40
        $region39: #{tpu_custom_call.1} parent=11 // pred_region
          %s363 = ssub.s32 512, 512
          %364 = vsyncadd [#allocation9], %s363
          %s365 = sshll.u32 [#allocation10], 4
          %s366 = int_to_ptr.vmem [resolvable:$true] %s365
          %371 = dma.hbm_to_vmem [thread:$0]  %s7, 512, %s366, [#allocation9], 128, 128, 8
        $region40: #{tpu_custom_call.1} parent=11 // pred_fallthru
          _
        // Predicated region
        $region41: #{tpu_custom_call.1} parent=11 // pred_check
          %p372 = pneg %p218
        $region42: #{tpu_custom_call.1} parent=11 // pred_check_branch
          %374 = sbr.rel (%p372) target = $region44
        $region43: #{tpu_custom_call.1} parent=11 // pred_region
          %s376 = ssub.s32 2048, 2048
          %377 = vsyncadd [#allocation12], %s376
          %s378 = sshll.u32 [#allocation11], 4
          %s379 = int_to_ptr.vmem [resolvable:$true] %s378
          %384 = dma.hbm_to_vmem [thread:$0]  %s8, 2048, %s379, [#allocation12], 512, 512, 32
        $region44: #{tpu_custom_call.1} parent=11 // pred_fallthru
          _
        // Predicated region
        $region45: #{tpu_custom_call.1} parent=11 // pred_check
          %p385 = pneg %p239
        $region46: #{tpu_custom_call.1} parent=11 // pred_check_branch
          %387 = sbr.rel (%p385) target = $region48
        $region47: #{tpu_custom_call.1} parent=11 // pred_region
          _
        $region48: #{tpu_custom_call.1} parent=11 // pred_fallthru
          _
        // Predicated region
        $region49: #{tpu_custom_call.1} parent=11 // pred_check
          %p388 = pneg %p260
        $region50: #{tpu_custom_call.1} parent=11 // pred_check_branch
          %390 = sbr.rel (%p388) target = $region52
        $region51: #{tpu_custom_call.1} parent=11 // pred_region
          _
        $region52: #{tpu_custom_call.1} parent=11 // pred_fallthru
          _
      $region12: #{tpu_custom_call.1} parent=5 // pred_fallthru
        _
      %p391 = scmp.lt.s32.totalorder %s24, 2
      // Predicated region
      $region53: #{tpu_custom_call.1} parent=5 // pred_check
        %p392 = pneg %p391
      $region54: #{tpu_custom_call.1} parent=5 // pred_check_branch
        %394 = sbr.rel (%p392) target = $region56
      $region55: #{tpu_custom_call.1} parent=5 // pred_region
        // Predicated region
        $region57: #{tpu_custom_call.1} parent=55 // pred_check
          %p395 = pneg %p44
        $region58: #{tpu_custom_call.1} parent=55 // pred_check_branch
          %397 = sbr.rel (%p395) target = $region60
        $region59: #{tpu_custom_call.1} parent=55 // pred_region
          %s398 = smul.u32 4, %s24
          %p399 = scmp.lt.s32.totalorder %s398, 7
          %s400 = scalar_select %p399, %s398, 7
          %s401 = scalar_lea.vmem %s0, %s400
          %s402 = smul.u32 4, %s24
        $region60: #{tpu_custom_call.1} parent=55 // pred_fallthru
          _
      $region56: #{tpu_custom_call.1} parent=5 // pred_fallthru
        _
      %p403 = scmp.le.s32.totalorder 1, %s24
      %p404 = scmp.lt.s32.totalorder %s24, 3
      %p405 = pnand %p403, %p404
      %p406 = pneg %p405
      // Predicated region
      $region61: #{tpu_custom_call.1} parent=5 // pred_check
        _
      $region62: #{tpu_custom_call.1} parent=5 // pred_check_branch
        %408 = sbr.rel (%p405) target = $region64
      $region63: #{tpu_custom_call.1} parent=5 // pred_region
        %s409 = ssub.s32 %s24, 1
        // Predicated region
        $region65: #{tpu_custom_call.1} parent=63 // pred_check
          %p410 = pneg %p92
        $region66: #{tpu_custom_call.1} parent=63 // pred_check_branch
          %412 = sbr.rel (%p410) target = $region68
        $region67: #{tpu_custom_call.1} parent=63 // pred_region
          %413 = dma.done [#allocation3], 2048
        $region68: #{tpu_custom_call.1} parent=63 // pred_fallthru
          _
        // Predicated region
        $region69: #{tpu_custom_call.1} parent=63 // pred_check
          %p414 = pneg %p134
        $region70: #{tpu_custom_call.1} parent=63 // pred_check_branch
          %416 = sbr.rel (%p414) target = $region72
        $region71: #{tpu_custom_call.1} parent=63 // pred_region
          %417 = dma.done [#allocation6], 2048
        $region72: #{tpu_custom_call.1} parent=63 // pred_fallthru
          _
        // Predicated region
        $region73: #{tpu_custom_call.1} parent=63 // pred_check
          %p418 = pneg %p155
        $region74: #{tpu_custom_call.1} parent=63 // pred_check_branch
          %420 = sbr.rel (%p418) target = $region76
        $region75: #{tpu_custom_call.1} parent=63 // pred_region
          %421 = dma.done [#allocation6], 512
        $region76: #{tpu_custom_call.1} parent=63 // pred_fallthru
          _
        // Predicated region
        $region77: #{tpu_custom_call.1} parent=63 // pred_check
          %p422 = pneg %p176
        $region78: #{tpu_custom_call.1} parent=63 // pred_check_branch
          %424 = sbr.rel (%p422) target = $region80
        $region79: #{tpu_custom_call.1} parent=63 // pred_region
          %425 = dma.done [#allocation9], 2048
        $region80: #{tpu_custom_call.1} parent=63 // pred_fallthru
          _
        // Predicated region
        $region81: #{tpu_custom_call.1} parent=63 // pred_check
          %p426 = pneg %p197
        $region82: #{tpu_custom_call.1} parent=63 // pred_check_branch
          %428 = sbr.rel (%p426) target = $region84
        $region83: #{tpu_custom_call.1} parent=63 // pred_region
          %429 = dma.done [#allocation9], 512
        $region84: #{tpu_custom_call.1} parent=63 // pred_fallthru
          _
        // Predicated region
        $region85: #{tpu_custom_call.1} parent=63 // pred_check
          %p430 = pneg %p218
        $region86: #{tpu_custom_call.1} parent=63 // pred_check_branch
          %432 = sbr.rel (%p430) target = $region88
        $region87: #{tpu_custom_call.1} parent=63 // pred_region
          %433 = dma.done [#allocation12], 2048
        $region88: #{tpu_custom_call.1} parent=63 // pred_fallthru
          _
        %s434 = smul.u32 4, %s29
        %p435 = scmp.lt.s32.totalorder %s434, 7
        %s436 = scalar_select %p435, %s434, 7
        %s437 = scalar_lea.vmem %s0, %s436
        %p438 = pneg %p50
        %p439 = pneg %p47
        %p440 = pneg %p71
        %p441 = pneg %p68
        %p442 = pneg %p92
        %p443 = pneg %p89
        %p444 = pneg %p113
        %p445 = pneg %p110
        %p446 = pneg %p134
        %p447 = pneg %p131
        %p448 = pneg %p155
        %p449 = pneg %p152
        %p450 = pneg %p176
        %p451 = pneg %p173
        %p452 = pneg %p197
        %p453 = pneg %p194
        %p454 = pneg %p218
        %p455 = pneg %p215
        %p456 = pneg %p239
        %p457 = pneg %p236
        %p458 = pneg %p260
        %p459 = pneg %p257
        %p460 = pneg %p286
        %p461 = pneg %p283
        %s462 = sand.u32 %s273, 1
        %s463 = scalar_lea.sflag [#allocation4], %s462
        %s464 = sand.u32 %s273, 1
        %s465 = smul.addr %s464, 4
        %s466 = scalar_lea.vmem [#allocation13], %s465
        %s467 = smul.u32 4, %s29
        %p468 = scmp.lt.s32.totalorder %s467, 7
        %s469 = scalar_select %p468, %s467, 7
        %s470 = scalar_lea.vmem %s0, %s469
        %s471 = smul.u32 4, %s29
        %s472 = smul.u32 4, %s29
        %v473 = vld [vmem:[%s470] sm:$0xf]
        %v474 = vld [vmem:[%s1] sm:$0xff]
        %v475 = vld [vmem:[%s1 + $0x8] sm:$0xff]
        %v476 = vld [vmem:[%s1 + $0x10] sm:$0xff]
        %v477 = vld [vmem:[%s1 + $0x18] sm:$0xff]
        %479 = vset.pattern.permute.xlu0 0
        %480 = vperm.xlu0 %479, %v474
        %v481 = vpop.permute.xlu0 %480
        %484 = vset.pattern.permute.xlu0 0
        %485 = vperm.xlu0 %484, %v475
        %v486 = vpop.permute.xlu0 %485
        %489 = vset.pattern.permute.xlu0 0
        %490 = vperm.xlu0 %489, %v476
        %v491 = vpop.permute.xlu0 %490
        %494 = vset.pattern.permute.xlu0 0
        %495 = vperm.xlu0 %494, %v477
        %v496 = vpop.permute.xlu0 %495
        %v499 = vlaneseq
        %v500 = vshrl.u32 %v499, 7
        %v501 = vsub.s32 0, %v500
        %v502 = vrot.slane %v473, %v501
        %v503 = vlaneseq
        %v504 = vshrl.u32 %v503, 7
        %v505 = vsub.s32 1, %v504
        %v506 = vrot.slane %v473, %v505
        %v507 = vlaneseq
        %v508 = vshrl.u32 %v507, 7
        %v509 = vsub.s32 2, %v508
        %v510 = vrot.slane %v473, %v509
        %v511 = vlaneseq
        %v512 = vshrl.u32 %v511, 7
        %v513 = vsub.s32 3, %v512
        %v514 = vrot.slane %v473, %v513
        %v519 = vmul.f32 %v481, %v502
        %v520 = vmul.f32 %v481, %v506
        %v521 = vmul.f32 %v481, %v510
        %v522 = vmul.f32 %v481, %v514
        %v523 = vmul.f32 %v486, %v502
        %v524 = vmul.f32 %v486, %v506
        %v525 = vmul.f32 %v486, %v510
        %v526 = vmul.f32 %v486, %v514
        %v527 = vmul.f32 %v491, %v502
        %v528 = vmul.f32 %v491, %v506
        %v529 = vmul.f32 %v491, %v510
        %v530 = vmul.f32 %v491, %v514
        %v531 = vmul.f32 %v496, %v502
        %v532 = vmul.f32 %v496, %v506
        %v533 = vmul.f32 %v496, %v510
        %v534 = vmul.f32 %v496, %v514
        %v535 = vld [vmem:[#allocation2] sm:$0xff]
        %v536 = vld [vmem:[#allocation2 + $0x8] sm:$0xff]
        %v537 = vld [vmem:[#allocation2 + $0x10] sm:$0xff]
        %v538 = vld [vmem:[#allocation2 + $0x18] sm:$0xff]
        %v539 = vld [vmem:[#allocation2 + $0x20] sm:$0xff]
        %v540 = vld [vmem:[#allocation2 + $0x28] sm:$0xff]
        %v541 = vld [vmem:[#allocation2 + $0x30] sm:$0xff]
        %v542 = vld [vmem:[#allocation2 + $0x38] sm:$0xff]
        %v543 = vld [vmem:[#allocation2 + $0x40] sm:$0xff]
        %v544 = vld [vmem:[#allocation2 + $0x48] sm:$0xff]
        %v545 = vld [vmem:[#allocation2 + $0x50] sm:$0xff]
        %v546 = vld [vmem:[#allocation2 + $0x58] sm:$0xff]
        %v547 = vld [vmem:[#allocation2 + $0x60] sm:$0xff]
        %v548 = vld [vmem:[#allocation2 + $0x68] sm:$0xff]
        %v549 = vld [vmem:[#allocation2 + $0x70] sm:$0xff]
        %v550 = vld [vmem:[#allocation2 + $0x78] sm:$0xff]
        %v551 = vadd.f32 %v519, %v535
        %v552 = vadd.f32 %v520, %v536
        %v553 = vadd.f32 %v521, %v537
        %v554 = vadd.f32 %v522, %v538
        %v555 = vadd.f32 %v523, %v539
        %v556 = vadd.f32 %v524, %v540
        %v557 = vadd.f32 %v525, %v541
        %v558 = vadd.f32 %v526, %v542
        %v559 = vadd.f32 %v527, %v543
        %v560 = vadd.f32 %v528, %v544
        %v561 = vadd.f32 %v529, %v545
        %v562 = vadd.f32 %v530, %v546
        %v563 = vadd.f32 %v531, %v547
        %v564 = vadd.f32 %v532, %v548
        %v565 = vadd.f32 %v533, %v549
        %v566 = vadd.f32 %v534, %v550
        %v567 = vtanh.pop %v551
        %v568 = vtanh.pop %v552
        %v569 = vtanh.pop %v553
        %v570 = vtanh.pop %v554
        %v571 = vtanh.pop %v555
        %v572 = vtanh.pop %v556
        %v573 = vtanh.pop %v557
        %v574 = vtanh.pop %v558
        %v575 = vtanh.pop %v559
        %v576 = vtanh.pop %v560
        %v577 = vtanh.pop %v561
        %v578 = vtanh.pop %v562
        %v579 = vtanh.pop %v563
        %v580 = vtanh.pop %v564
        %v581 = vtanh.pop %v565
        %v582 = vtanh.pop %v566
        %v583 = vld [vmem:[%s3] sm:$0xff]
        %v584 = vld [vmem:[%s3 + $0x8] sm:$0xff]
        %v585 = vld [vmem:[%s3 + $0x10] sm:$0xff]
        %v586 = vld [vmem:[%s3 + $0x18] sm:$0xff]
        %v587 = vld [vmem:[#allocation5] sm:$0xff]
        %v588 = vld [vmem:[#allocation5 + $0x8] sm:$0xff]
        %v589 = vld [vmem:[#allocation5 + $0x10] sm:$0xff]
        %v590 = vld [vmem:[#allocation5 + $0x18] sm:$0xff]
        %v591 = vld [vmem:[#allocation5 + $0x20] sm:$0xff]
        %v592 = vld [vmem:[#allocation5 + $0x28] sm:$0xff]
        %v593 = vld [vmem:[#allocation5 + $0x30] sm:$0xff]
        %v594 = vld [vmem:[#allocation5 + $0x38] sm:$0xff]
        %v595 = vld [vmem:[#allocation5 + $0x40] sm:$0xff]
        %v596 = vld [vmem:[#allocation5 + $0x48] sm:$0xff]
        %v597 = vld [vmem:[#allocation5 + $0x50] sm:$0xff]
        %v598 = vld [vmem:[#allocation5 + $0x58] sm:$0xff]
        %v599 = vld [vmem:[#allocation5 + $0x60] sm:$0xff]
        %v600 = vld [vmem:[#allocation5 + $0x68] sm:$0xff]
        %v601 = vld [vmem:[#allocation5 + $0x70] sm:$0xff]
        %v602 = vld [vmem:[#allocation5 + $0x78] sm:$0xff]
        %vm603 = vcmask 261120
        %v605 = vsel %vm603, %v583, 0
        %v608 = vsel %vm603, %v584, 0
        %v611 = vsel %vm603, %v585, 0
        %v614 = vsel %vm603, %v586, 0
        %616 = vmatprep.subr.mxu0 %v568
        %617 = vmatpush1.msra.mxu0 %v567
        %618 = vmatprep.subr.mxu0 %v572
        %619 = vmatpush1.msra.mxu0 %v571
        %620 = vmatprep.subr.mxu0 %v576
        %621 = vmatpush1.msra.mxu0 %v575
        %622 = vmatprep.subr.mxu0 %v580
        %623 = vmatpush1.msra.mxu0 %v579
        %624 = vmatprep.subr.mxu0 0.0
        %625 = vmatpush1.msra.mxu0 0.0
        %626 = vmatprep.subr.mxu0 0.0
        %627 = vmatpush1.msra.mxu0 0.0
        %628 = vmatprep.subr.mxu0 0.0
        %629 = vmatpush1.msra.mxu0 0.0
        %630 = vmatprep.subr.mxu0 0.0
        %631 = vmatpush1.msra.mxu0 0.0
        %632 = vmatprep.subr.mxu0 0.0
        %633 = vmatpush1.msra.mxu0 0.0
        %634 = vmatprep.subr.mxu0 0.0
        %635 = vmatpush1.msra.mxu0 0.0
        %636 = vmatprep.subr.mxu0 0.0
        %637 = vmatpush1.msra.mxu0 0.0
        %638 = vmatprep.subr.mxu0 0.0
        %639 = vmatpush1.msra.mxu0 0.0
        %640 = vmatprep.subr.mxu0 0.0
        %641 = vmatpush1.msra.mxu0 0.0
        %642 = vmatprep.subr.mxu0 0.0
        %643 = vmatpush1.msra.mxu0 0.0
        %644 = vmatprep.subr.mxu0 0.0
        %645 = vmatpush1.msra.mxu0 0.0
        %646 = vmatprep.subr.mxu0 0.0
        %647 = vmatpush1.msra.mxu0 0.0
        %648 = vmatprep.subr.mxu0 0.0
        %649 = vmatpush1.msra.mxu0 0.0
        %650 = vmatprep.subr.mxu0 0.0
        %651 = vmatpush1.msra.mxu0 0.0
        %652 = vmatprep.subr.mxu0 0.0
        %653 = vmatpush1.msra.mxu0 0.0
        %654 = vmatprep.subr.mxu0 0.0
        %655 = vmatpush1.msra.mxu0 0.0
        %656 = vmatprep.subr.mxu0 0.0
        %657 = vmatpush1.msra.mxu0 0.0
        %658 = vmatprep.subr.mxu0 0.0
        %659 = vmatpush1.msra.mxu0 0.0
        %660 = vmatprep.subr.mxu0 0.0
        %661 = vmatpush1.msra.mxu0 0.0
        %662 = vmatprep.subr.mxu0 0.0
        %663 = vmatpush1.msra.mxu0 0.0
        %664 = vmatprep.subr.mxu0 0.0
        %665 = vmatpush1.msra.mxu0 0.0
        %666 = vmatprep.subr.mxu0 0.0
        %667 = vmatpush1.msra.mxu0 0.0
        %668 = vmatprep.subr.mxu0 0.0
        %669 = vmatpush1.msra.mxu0 0.0
        %670 = vmatprep.subr.mxu0 0.0
        %671 = vmatpush1.msra.mxu0 0.0
        %672 = vmatprep.subr.mxu0 0.0
        %673 = vmatpush1.msra.mxu0 0.0
        %674 = vmatprep.subr.mxu0 0.0
        %675 = vmatpush1.msra.mxu0 0.0
        %676 = vmatprep.subr.mxu0 0.0
        %677 = vmatpush1.msra.mxu0 0.0
        %678 = vmatprep.subr.mxu0 0.0
        %679 = vmatpush1.msra.mxu0 0.0
        %680 = vmatprep.mubr.f32.mxu0 0.0
        %681 = vmatmul.mubr.f32.gmra.mrb[0].mxu0 %v605
        %v682 = vpop.f32.mrb[0].mxu0
        %v683 = vadd.f32 %v587, %v682
        %v684 = vpop.f32.mrb[0].mxu0
        %v685 = vadd.f32 %v588, %v684
        %686 = vmatprep.mubr.f32.mxu0 0.0
        %687 = vmatmul.mubr.f32.gmra.mrb[0].mxu0 %v608
        %v688 = vpop.f32.mrb[0].mxu0
        %v689 = vadd.f32 %v591, %v688
        %v690 = vpop.f32.mrb[0].mxu0
        %v691 = vadd.f32 %v592, %v690
        %692 = vmatprep.mubr.f32.mxu0 0.0
        %693 = vmatmul.mubr.f32.gmra.mrb[0].mxu0 %v611
        %v694 = vpop.f32.mrb[0].mxu0
        %v695 = vadd.f32 %v595, %v694
        %v696 = vpop.f32.mrb[0].mxu0
        %v697 = vadd.f32 %v596, %v696
        %698 = vmatprep.mubr.f32.mxu0 0.0
        %699 = vmatmul.mubr.f32.gmra.mrb[0].mxu0 %v614
        %v700 = vpop.f32.mrb[0].mxu0
        %v701 = vadd.f32 %v599, %v700
        %v702 = vpop.f32.mrb[0].mxu0
        %v703 = vadd.f32 %v600, %v702
        %704 = vdwg.mxu0
        %705 = vmatprep.subr.mxu0 %v570
        %706 = vmatpush1.msra.mxu0 %v569
        %707 = vmatprep.subr.mxu0 %v574
        %708 = vmatpush1.msra.mxu0 %v573
        %709 = vmatprep.subr.mxu0 %v578
        %710 = vmatpush1.msra.mxu0 %v577
        %711 = vmatprep.subr.mxu0 %v582
        %712 = vmatpush1.msra.mxu0 %v581
        %713 = vmatprep.subr.mxu0 0.0
        %714 = vmatpush1.msra.mxu0 0.0
        %715 = vmatprep.subr.mxu0 0.0
        %716 = vmatpush1.msra.mxu0 0.0
        %717 = vmatprep.subr.mxu0 0.0
        %718 = vmatpush1.msra.mxu0 0.0
        %719 = vmatprep.subr.mxu0 0.0
        %720 = vmatpush1.msra.mxu0 0.0
        %721 = vmatprep.subr.mxu0 0.0
        %722 = vmatpush1.msra.mxu0 0.0
        %723 = vmatprep.subr.mxu0 0.0
        %724 = vmatpush1.msra.mxu0 0.0
        %725 = vmatprep.subr.mxu0 0.0
        %726 = vmatpush1.msra.mxu0 0.0
        %727 = vmatprep.subr.mxu0 0.0
        %728 = vmatpush1.msra.mxu0 0.0
        %729 = vmatprep.subr.mxu0 0.0
        %730 = vmatpush1.msra.mxu0 0.0
        %731 = vmatprep.subr.mxu0 0.0
        %732 = vmatpush1.msra.mxu0 0.0
        %733 = vmatprep.subr.mxu0 0.0
        %734 = vmatpush1.msra.mxu0 0.0
        %735 = vmatprep.subr.mxu0 0.0
        %736 = vmatpush1.msra.mxu0 0.0
        %737 = vmatprep.subr.mxu0 0.0
        %738 = vmatpush1.msra.mxu0 0.0
        %739 = vmatprep.subr.mxu0 0.0
        %740 = vmatpush1.msra.mxu0 0.0
        %741 = vmatprep.subr.mxu0 0.0
        %742 = vmatpush1.msra.mxu0 0.0
        %743 = vmatprep.subr.mxu0 0.0
        %744 = vmatpush1.msra.mxu0 0.0
        %745 = vmatprep.subr.mxu0 0.0
        %746 = vmatpush1.msra.mxu0 0.0
        %747 = vmatprep.subr.mxu0 0.0
        %748 = vmatpush1.msra.mxu0 0.0
        %749 = vmatprep.subr.mxu0 0.0
        %750 = vmatpush1.msra.mxu0 0.0
        %751 = vmatprep.subr.mxu0 0.0
        %752 = vmatpush1.msra.mxu0 0.0
        %753 = vmatprep.subr.mxu0 0.0
        %754 = vmatpush1.msra.mxu0 0.0
        %755 = vmatprep.subr.mxu0 0.0
        %756 = vmatpush1.msra.mxu0 0.0
        %757 = vmatprep.subr.mxu0 0.0
        %758 = vmatpush1.msra.mxu0 0.0
        %759 = vmatprep.subr.mxu0 0.0
        %760 = vmatpush1.msra.mxu0 0.0
        %761 = vmatprep.subr.mxu0 0.0
        %762 = vmatpush1.msra.mxu0 0.0
        %763 = vmatprep.subr.mxu0 0.0
        %764 = vmatpush1.msra.mxu0 0.0
        %765 = vmatprep.subr.mxu0 0.0
        %766 = vmatpush1.msra.mxu0 0.0
        %767 = vmatprep.subr.mxu0 0.0
        %768 = vmatpush1.msra.mxu0 0.0
        %769 = vmatprep.mubr.f32.mxu0 0.0
        %770 = vmatmul.mubr.f32.gmra.mrb[0].mxu0 %v605
        %v771 = vpop.f32.mrb[0].mxu0
        %v772 = vadd.f32 %v589, %v771
        %v773 = vpop.f32.mrb[0].mxu0
        %v774 = vadd.f32 %v590, %v773
        %775 = vmatprep.mubr.f32.mxu0 0.0
        %776 = vmatmul.mubr.f32.gmra.mrb[0].mxu0 %v608
        %v777 = vpop.f32.mrb[0].mxu0
        %v778 = vadd.f32 %v593, %v777
        %v779 = vpop.f32.mrb[0].mxu0
        %v780 = vadd.f32 %v594, %v779
        %781 = vmatprep.mubr.f32.mxu0 0.0
        %782 = vmatmul.mubr.f32.gmra.mrb[0].mxu0 %v611
        %v783 = vpop.f32.mrb[0].mxu0
        %v784 = vadd.f32 %v597, %v783
        %v785 = vpop.f32.mrb[0].mxu0
        %v786 = vadd.f32 %v598, %v785
        %787 = vmatprep.mubr.f32.mxu0 0.0
        %788 = vmatmul.mubr.f32.gmra.mrb[0].mxu0 %v614
        %v789 = vpop.f32.mrb[0].mxu0
        %v790 = vadd.f32 %v601, %v789
        %v791 = vpop.f32.mrb[0].mxu0
        %v792 = vadd.f32 %v602, %v791
        %793 = vdwg.mxu0
        %v794 = vtanh.pop %v683
        %v795 = vtanh.pop %v685
        %v796 = vtanh.pop %v772
        %v797 = vtanh.pop %v774
        %v798 = vtanh.pop %v689
        %v799 = vtanh.pop %v691
        %v800 = vtanh.pop %v778
        %v801 = vtanh.pop %v780
        %v802 = vtanh.pop %v695
        %v803 = vtanh.pop %v697
        %v804 = vtanh.pop %v784
        %v805 = vtanh.pop %v786
        %v806 = vtanh.pop %v701
        %v807 = vtanh.pop %v703
        %v808 = vtanh.pop %v790
        %v809 = vtanh.pop %v792
        %v810 = vld [vmem:[#allocation7] sm:$0xff]
        %v811 = vld [vmem:[#allocation7 + $0x8] sm:$0xff]
        %v812 = vld [vmem:[#allocation7 + $0x10] sm:$0xff]
        %v813 = vld [vmem:[#allocation7 + $0x18] sm:$0xff]
        %v814 = vld [vmem:[#allocation8] sm:$0xff]
        %v815 = vld [vmem:[#allocation8 + $0x8] sm:$0xff]
        %v816 = vld [vmem:[#allocation8 + $0x10] sm:$0xff]
        %v817 = vld [vmem:[#allocation8 + $0x18] sm:$0xff]
        %v818 = vld [vmem:[#allocation8 + $0x20] sm:$0xff]
        %v819 = vld [vmem:[#allocation8 + $0x28] sm:$0xff]
        %v820 = vld [vmem:[#allocation8 + $0x30] sm:$0xff]
        %v821 = vld [vmem:[#allocation8 + $0x38] sm:$0xff]
        %v822 = vld [vmem:[#allocation8 + $0x40] sm:$0xff]
        %v823 = vld [vmem:[#allocation8 + $0x48] sm:$0xff]
        %v824 = vld [vmem:[#allocation8 + $0x50] sm:$0xff]
        %v825 = vld [vmem:[#allocation8 + $0x58] sm:$0xff]
        %v826 = vld [vmem:[#allocation8 + $0x60] sm:$0xff]
        %v827 = vld [vmem:[#allocation8 + $0x68] sm:$0xff]
        %v828 = vld [vmem:[#allocation8 + $0x70] sm:$0xff]
        %v829 = vld [vmem:[#allocation8 + $0x78] sm:$0xff]
        %v831 = vsel %vm603, %v810, 0
        %v834 = vsel %vm603, %v811, 0
        %v837 = vsel %vm603, %v812, 0
        %v840 = vsel %vm603, %v813, 0
        %842 = vmatprep.subr.mxu0 %v795
        %843 = vmatpush1.msra.mxu0 %v794
        %844 = vmatprep.subr.mxu0 %v799
        %845 = vmatpush1.msra.mxu0 %v798
        %846 = vmatprep.subr.mxu0 %v803
        %847 = vmatpush1.msra.mxu0 %v802
        %848 = vmatprep.subr.mxu0 %v807
        %849 = vmatpush1.msra.mxu0 %v806
        %850 = vmatprep.subr.mxu0 0.0
        %851 = vmatpush1.msra.mxu0 0.0
        %852 = vmatprep.subr.mxu0 0.0
        %853 = vmatpush1.msra.mxu0 0.0
        %854 = vmatprep.subr.mxu0 0.0
        %855 = vmatpush1.msra.mxu0 0.0
        %856 = vmatprep.subr.mxu0 0.0
        %857 = vmatpush1.msra.mxu0 0.0
        %858 = vmatprep.subr.mxu0 0.0
        %859 = vmatpush1.msra.mxu0 0.0
        %860 = vmatprep.subr.mxu0 0.0
        %861 = vmatpush1.msra.mxu0 0.0
        %862 = vmatprep.subr.mxu0 0.0
        %863 = vmatpush1.msra.mxu0 0.0
        %864 = vmatprep.subr.mxu0 0.0
        %865 = vmatpush1.msra.mxu0 0.0
        %866 = vmatprep.subr.mxu0 0.0
        %867 = vmatpush1.msra.mxu0 0.0
        %868 = vmatprep.subr.mxu0 0.0
        %869 = vmatpush1.msra.mxu0 0.0
        %870 = vmatprep.subr.mxu0 0.0
        %871 = vmatpush1.msra.mxu0 0.0
        %872 = vmatprep.subr.mxu0 0.0
        %873 = vmatpush1.msra.mxu0 0.0
        %874 = vmatprep.subr.mxu0 0.0
        %875 = vmatpush1.msra.mxu0 0.0
        %876 = vmatprep.subr.mxu0 0.0
        %877 = vmatpush1.msra.mxu0 0.0
        %878 = vmatprep.subr.mxu0 0.0
        %879 = vmatpush1.msra.mxu0 0.0
        %880 = vmatprep.subr.mxu0 0.0
        %881 = vmatpush1.msra.mxu0 0.0
        %882 = vmatprep.subr.mxu0 0.0
        %883 = vmatpush1.msra.mxu0 0.0
        %884 = vmatprep.subr.mxu0 0.0
        %885 = vmatpush1.msra.mxu0 0.0
        %886 = vmatprep.subr.mxu0 0.0
        %887 = vmatpush1.msra.mxu0 0.0
        %888 = vmatprep.subr.mxu0 0.0
        %889 = vmatpush1.msra.mxu0 0.0
        %890 = vmatprep.subr.mxu0 0.0
        %891 = vmatpush1.msra.mxu0 0.0
        %892 = vmatprep.subr.mxu0 0.0
        %893 = vmatpush1.msra.mxu0 0.0
        %894 = vmatprep.subr.mxu0 0.0
        %895 = vmatpush1.msra.mxu0 0.0
        %896 = vmatprep.subr.mxu0 0.0
        %897 = vmatpush1.msra.mxu0 0.0
        %898 = vmatprep.subr.mxu0 0.0
        %899 = vmatpush1.msra.mxu0 0.0
        %900 = vmatprep.subr.mxu0 0.0
        %901 = vmatpush1.msra.mxu0 0.0
        %902 = vmatprep.subr.mxu0 0.0
        %903 = vmatpush1.msra.mxu0 0.0
        %904 = vmatprep.subr.mxu0 0.0
        %905 = vmatpush1.msra.mxu0 0.0
        %906 = vmatprep.mubr.f32.mxu0 0.0
        %907 = vmatmul.mubr.f32.gmra.mrb[0].mxu0 %v831
        %v908 = vpop.f32.mrb[0].mxu0
        %v909 = vadd.f32 %v814, %v908
        %v910 = vpop.f32.mrb[0].mxu0
        %v911 = vadd.f32 %v815, %v910
        %912 = vmatprep.mubr.f32.mxu0 0.0
        %913 = vmatmul.mubr.f32.gmra.mrb[0].mxu0 %v834
        %v914 = vpop.f32.mrb[0].mxu0
        %v915 = vadd.f32 %v818, %v914
        %v916 = vpop.f32.mrb[0].mxu0
        %v917 = vadd.f32 %v819, %v916
        %918 = vmatprep.mubr.f32.mxu0 0.0
        %919 = vmatmul.mubr.f32.gmra.mrb[0].mxu0 %v837
        %v920 = vpop.f32.mrb[0].mxu0
        %v921 = vadd.f32 %v822, %v920
        %v922 = vpop.f32.mrb[0].mxu0
        %v923 = vadd.f32 %v823, %v922
        %924 = vmatprep.mubr.f32.mxu0 0.0
        %925 = vmatmul.mubr.f32.gmra.mrb[0].mxu0 %v840
        %v926 = vpop.f32.mrb[0].mxu0
        %v927 = vadd.f32 %v826, %v926
        %v928 = vpop.f32.mrb[0].mxu0
        %v929 = vadd.f32 %v827, %v928
        %930 = vdwg.mxu0
        %931 = vmatprep.subr.mxu0 %v797
        %932 = vmatpush1.msra.mxu0 %v796
        %933 = vmatprep.subr.mxu0 %v801
        %934 = vmatpush1.msra.mxu0 %v800
        %935 = vmatprep.subr.mxu0 %v805
        %936 = vmatpush1.msra.mxu0 %v804
        %937 = vmatprep.subr.mxu0 %v809
        %938 = vmatpush1.msra.mxu0 %v808
        %939 = vmatprep.subr.mxu0 0.0
        %940 = vmatpush1.msra.mxu0 0.0
        %941 = vmatprep.subr.mxu0 0.0
        %942 = vmatpush1.msra.mxu0 0.0
        %943 = vmatprep.subr.mxu0 0.0
        %944 = vmatpush1.msra.mxu0 0.0
        %945 = vmatprep.subr.mxu0 0.0
        %946 = vmatpush1.msra.mxu0 0.0
        %947 = vmatprep.subr.mxu0 0.0
        %948 = vmatpush1.msra.mxu0 0.0
        %949 = vmatprep.subr.mxu0 0.0
        %950 = vmatpush1.msra.mxu0 0.0
        %951 = vmatprep.subr.mxu0 0.0
        %952 = vmatpush1.msra.mxu0 0.0
        %953 = vmatprep.subr.mxu0 0.0
        %954 = vmatpush1.msra.mxu0 0.0
        %955 = vmatprep.subr.mxu0 0.0
        %956 = vmatpush1.msra.mxu0 0.0
        %957 = vmatprep.subr.mxu0 0.0
        %958 = vmatpush1.msra.mxu0 0.0
        %959 = vmatprep.subr.mxu0 0.0
        %960 = vmatpush1.msra.mxu0 0.0
        %961 = vmatprep.subr.mxu0 0.0
        %962 = vmatpush1.msra.mxu0 0.0
        %963 = vmatprep.subr.mxu0 0.0
        %964 = vmatpush1.msra.mxu0 0.0
        %965 = vmatprep.subr.mxu0 0.0
        %966 = vmatpush1.msra.mxu0 0.0
        %967 = vmatprep.subr.mxu0 0.0
        %968 = vmatpush1.msra.mxu0 0.0
        %969 = vmatprep.subr.mxu0 0.0
        %970 = vmatpush1.msra.mxu0 0.0
        %971 = vmatprep.subr.mxu0 0.0
        %972 = vmatpush1.msra.mxu0 0.0
        %973 = vmatprep.subr.mxu0 0.0
        %974 = vmatpush1.msra.mxu0 0.0
        %975 = vmatprep.subr.mxu0 0.0
        %976 = vmatpush1.msra.mxu0 0.0
        %977 = vmatprep.subr.mxu0 0.0
        %978 = vmatpush1.msra.mxu0 0.0
        %979 = vmatprep.subr.mxu0 0.0
        %980 = vmatpush1.msra.mxu0 0.0
        %981 = vmatprep.subr.mxu0 0.0
        %982 = vmatpush1.msra.mxu0 0.0
        %983 = vmatprep.subr.mxu0 0.0
        %984 = vmatpush1.msra.mxu0 0.0
        %985 = vmatprep.subr.mxu0 0.0
        %986 = vmatpush1.msra.mxu0 0.0
        %987 = vmatprep.subr.mxu0 0.0
        %988 = vmatpush1.msra.mxu0 0.0
        %989 = vmatprep.subr.mxu0 0.0
        %990 = vmatpush1.msra.mxu0 0.0
        %991 = vmatprep.subr.mxu0 0.0
        %992 = vmatpush1.msra.mxu0 0.0
        %993 = vmatprep.subr.mxu0 0.0
        %994 = vmatpush1.msra.mxu0 0.0
        %995 = vmatprep.mubr.f32.mxu0 0.0
        %996 = vmatmul.mubr.f32.gmra.mrb[0].mxu0 %v831
        %v997 = vpop.f32.mrb[0].mxu0
        %v998 = vadd.f32 %v816, %v997
        %v999 = vpop.f32.mrb[0].mxu0
        %v1000 = vadd.f32 %v817, %v999
        %1001 = vmatprep.mubr.f32.mxu0 0.0
        %1002 = vmatmul.mubr.f32.gmra.mrb[0].mxu0 %v834
        %v1003 = vpop.f32.mrb[0].mxu0
        %v1004 = vadd.f32 %v820, %v1003
        %v1005 = vpop.f32.mrb[0].mxu0
        %v1006 = vadd.f32 %v821, %v1005
        %1007 = vmatprep.mubr.f32.mxu0 0.0
        %1008 = vmatmul.mubr.f32.gmra.mrb[0].mxu0 %v837
        %v1009 = vpop.f32.mrb[0].mxu0
        %v1010 = vadd.f32 %v824, %v1009
        %v1011 = vpop.f32.mrb[0].mxu0
        %v1012 = vadd.f32 %v825, %v1011
        %1013 = vmatprep.mubr.f32.mxu0 0.0
        %1014 = vmatmul.mubr.f32.gmra.mrb[0].mxu0 %v840
        %v1015 = vpop.f32.mrb[0].mxu0
        %v1016 = vadd.f32 %v828, %v1015
        %v1017 = vpop.f32.mrb[0].mxu0
        %v1018 = vadd.f32 %v829, %v1017
        %1019 = vdwg.mxu0
        %v1020 = vtanh.pop %v909
        %v1021 = vtanh.pop %v911
        %v1022 = vtanh.pop %v998
        %v1023 = vtanh.pop %v1000
        %v1024 = vtanh.pop %v915
        %v1025 = vtanh.pop %v917
        %v1026 = vtanh.pop %v1004
        %v1027 = vtanh.pop %v1006
        %v1028 = vtanh.pop %v921
        %v1029 = vtanh.pop %v923
        %v1030 = vtanh.pop %v1010
        %v1031 = vtanh.pop %v1012
        %v1032 = vtanh.pop %v927
        %v1033 = vtanh.pop %v929
        %v1034 = vtanh.pop %v1016
        %v1035 = vtanh.pop %v1018
        %v1036 = vld [vmem:[#allocation10] sm:$0xff]
        %v1037 = vld [vmem:[#allocation10 + $0x8] sm:$0xff]
        %v1038 = vld [vmem:[#allocation10 + $0x10] sm:$0xff]
        %v1039 = vld [vmem:[#allocation10 + $0x18] sm:$0xff]
        %v1040 = vld [vmem:[#allocation11] sm:$0xff]
        %v1041 = vld [vmem:[#allocation11 + $0x8] sm:$0xff]
        %v1042 = vld [vmem:[#allocation11 + $0x10] sm:$0xff]
        %v1043 = vld [vmem:[#allocation11 + $0x18] sm:$0xff]
        %v1044 = vld [vmem:[#allocation11 + $0x20] sm:$0xff]
        %v1045 = vld [vmem:[#allocation11 + $0x28] sm:$0xff]
        %v1046 = vld [vmem:[#allocation11 + $0x30] sm:$0xff]
        %v1047 = vld [vmem:[#allocation11 + $0x38] sm:$0xff]
        %v1048 = vld [vmem:[#allocation11 + $0x40] sm:$0xff]
        %v1049 = vld [vmem:[#allocation11 + $0x48] sm:$0xff]
        %v1050 = vld [vmem:[#allocation11 + $0x50] sm:$0xff]
        %v1051 = vld [vmem:[#allocation11 + $0x58] sm:$0xff]
        %v1052 = vld [vmem:[#allocation11 + $0x60] sm:$0xff]
        %v1053 = vld [vmem:[#allocation11 + $0x68] sm:$0xff]
        %v1054 = vld [vmem:[#allocation11 + $0x70] sm:$0xff]
        %v1055 = vld [vmem:[#allocation11 + $0x78] sm:$0xff]
        %v1057 = vsel %vm603, %v1036, 0
        %v1060 = vsel %vm603, %v1037, 0
        %v1063 = vsel %vm603, %v1038, 0
        %v1066 = vsel %vm603, %v1039, 0
        %1068 = vmatprep.subr.mxu0 %v1021
        %1069 = vmatpush1.msra.mxu0 %v1020
        %1070 = vmatprep.subr.mxu0 %v1025
        %1071 = vmatpush1.msra.mxu0 %v1024
        %1072 = vmatprep.subr.mxu0 %v1029
        %1073 = vmatpush1.msra.mxu0 %v1028
        %1074 = vmatprep.subr.mxu0 %v1033
        %1075 = vmatpush1.msra.mxu0 %v1032
        %1076 = vmatprep.subr.mxu0 0.0
        %1077 = vmatpush1.msra.mxu0 0.0
        %1078 = vmatprep.subr.mxu0 0.0
        %1079 = vmatpush1.msra.mxu0 0.0
        %1080 = vmatprep.subr.mxu0 0.0
        %1081 = vmatpush1.msra.mxu0 0.0
        %1082 = vmatprep.subr.mxu0 0.0
        %1083 = vmatpush1.msra.mxu0 0.0
        %1084 = vmatprep.subr.mxu0 0.0
        %1085 = vmatpush1.msra.mxu0 0.0
        %1086 = vmatprep.subr.mxu0 0.0
        %1087 = vmatpush1.msra.mxu0 0.0
        %1088 = vmatprep.subr.mxu0 0.0
        %1089 = vmatpush1.msra.mxu0 0.0
        %1090 = vmatprep.subr.mxu0 0.0
        %1091 = vmatpush1.msra.mxu0 0.0
        %1092 = vmatprep.subr.mxu0 0.0
        %1093 = vmatpush1.msra.mxu0 0.0
        %1094 = vmatprep.subr.mxu0 0.0
        %1095 = vmatpush1.msra.mxu0 0.0
        %1096 = vmatprep.subr.mxu0 0.0
        %1097 = vmatpush1.msra.mxu0 0.0
        %1098 = vmatprep.subr.mxu0 0.0
        %1099 = vmatpush1.msra.mxu0 0.0
        %1100 = vmatprep.subr.mxu0 0.0
        %1101 = vmatpush1.msra.mxu0 0.0
        %1102 = vmatprep.subr.mxu0 0.0
        %1103 = vmatpush1.msra.mxu0 0.0
        %1104 = vmatprep.subr.mxu0 0.0
        %1105 = vmatpush1.msra.mxu0 0.0
        %1106 = vmatprep.subr.mxu0 0.0
        %1107 = vmatpush1.msra.mxu0 0.0
        %1108 = vmatprep.subr.mxu0 0.0
        %1109 = vmatpush1.msra.mxu0 0.0
        %1110 = vmatprep.subr.mxu0 0.0
        %1111 = vmatpush1.msra.mxu0 0.0
        %1112 = vmatprep.subr.mxu0 0.0
        %1113 = vmatpush1.msra.mxu0 0.0
        %1114 = vmatprep.subr.mxu0 0.0
        %1115 = vmatpush1.msra.mxu0 0.0
        %1116 = vmatprep.subr.mxu0 0.0
        %1117 = vmatpush1.msra.mxu0 0.0
        %1118 = vmatprep.subr.mxu0 0.0
        %1119 = vmatpush1.msra.mxu0 0.0
        %1120 = vmatprep.subr.mxu0 0.0
        %1121 = vmatpush1.msra.mxu0 0.0
        %1122 = vmatprep.subr.mxu0 0.0
        %1123 = vmatpush1.msra.mxu0 0.0
        %1124 = vmatprep.subr.mxu0 0.0
        %1125 = vmatpush1.msra.mxu0 0.0
        %1126 = vmatprep.subr.mxu0 0.0
        %1127 = vmatpush1.msra.mxu0 0.0
        %1128 = vmatprep.subr.mxu0 0.0
        %1129 = vmatpush1.msra.mxu0 0.0
        %1130 = vmatprep.subr.mxu0 0.0
        %1131 = vmatpush1.msra.mxu0 0.0
        %1132 = vmatprep.mubr.f32.mxu0 0.0
        %1133 = vmatmul.mubr.f32.gmra.mrb[0].mxu0 %v1057
        %v1134 = vpop.f32.mrb[0].mxu0
        %v1135 = vadd.f32 %v1040, %v1134
        %v1136 = vpop.f32.mrb[0].mxu0
        %v1137 = vadd.f32 %v1041, %v1136
        %1138 = vmatprep.mubr.f32.mxu0 0.0
        %1139 = vmatmul.mubr.f32.gmra.mrb[0].mxu0 %v1060
        %v1140 = vpop.f32.mrb[0].mxu0
        %v1141 = vadd.f32 %v1044, %v1140
        %v1142 = vpop.f32.mrb[0].mxu0
        %v1143 = vadd.f32 %v1045, %v1142
        %1144 = vmatprep.mubr.f32.mxu0 0.0
        %1145 = vmatmul.mubr.f32.gmra.mrb[0].mxu0 %v1063
        %v1146 = vpop.f32.mrb[0].mxu0
        %v1147 = vadd.f32 %v1048, %v1146
        %v1148 = vpop.f32.mrb[0].mxu0
        %v1149 = vadd.f32 %v1049, %v1148
        %1150 = vmatprep.mubr.f32.mxu0 0.0
        %1151 = vmatmul.mubr.f32.gmra.mrb[0].mxu0 %v1066
        %v1152 = vpop.f32.mrb[0].mxu0
        %v1153 = vadd.f32 %v1052, %v1152
        %v1154 = vpop.f32.mrb[0].mxu0
        %v1155 = vadd.f32 %v1053, %v1154
        %1156 = vdwg.mxu0
        %1157 = vmatprep.subr.mxu0 %v1023
        %1158 = vmatpush1.msra.mxu0 %v1022
        %1159 = vmatprep.subr.mxu0 %v1027
        %1160 = vmatpush1.msra.mxu0 %v1026
        %1161 = vmatprep.subr.mxu0 %v1031
        %1162 = vmatpush1.msra.mxu0 %v1030
        %1163 = vmatprep.subr.mxu0 %v1035
        %1164 = vmatpush1.msra.mxu0 %v1034
        %1165 = vmatprep.subr.mxu0 0.0
        %1166 = vmatpush1.msra.mxu0 0.0
        %1167 = vmatprep.subr.mxu0 0.0
        %1168 = vmatpush1.msra.mxu0 0.0
        %1169 = vmatprep.subr.mxu0 0.0
        %1170 = vmatpush1.msra.mxu0 0.0
        %1171 = vmatprep.subr.mxu0 0.0
        %1172 = vmatpush1.msra.mxu0 0.0
        %1173 = vmatprep.subr.mxu0 0.0
        %1174 = vmatpush1.msra.mxu0 0.0
        %1175 = vmatprep.subr.mxu0 0.0
        %1176 = vmatpush1.msra.mxu0 0.0
        %1177 = vmatprep.subr.mxu0 0.0
        %1178 = vmatpush1.msra.mxu0 0.0
        %1179 = vmatprep.subr.mxu0 0.0
        %1180 = vmatpush1.msra.mxu0 0.0
        %1181 = vmatprep.subr.mxu0 0.0
        %1182 = vmatpush1.msra.mxu0 0.0
        %1183 = vmatprep.subr.mxu0 0.0
        %1184 = vmatpush1.msra.mxu0 0.0
        %1185 = vmatprep.subr.mxu0 0.0
        %1186 = vmatpush1.msra.mxu0 0.0
        %1187 = vmatprep.subr.mxu0 0.0
        %1188 = vmatpush1.msra.mxu0 0.0
        %1189 = vmatprep.subr.mxu0 0.0
        %1190 = vmatpush1.msra.mxu0 0.0
        %1191 = vmatprep.subr.mxu0 0.0
        %1192 = vmatpush1.msra.mxu0 0.0
        %1193 = vmatprep.subr.mxu0 0.0
        %1194 = vmatpush1.msra.mxu0 0.0
        %1195 = vmatprep.subr.mxu0 0.0
        %1196 = vmatpush1.msra.mxu0 0.0
        %1197 = vmatprep.subr.mxu0 0.0
        %1198 = vmatpush1.msra.mxu0 0.0
        %1199 = vmatprep.subr.mxu0 0.0
        %1200 = vmatpush1.msra.mxu0 0.0
        %1201 = vmatprep.subr.mxu0 0.0
        %1202 = vmatpush1.msra.mxu0 0.0
        %1203 = vmatprep.subr.mxu0 0.0
        %1204 = vmatpush1.msra.mxu0 0.0
        %1205 = vmatprep.subr.mxu0 0.0
        %1206 = vmatpush1.msra.mxu0 0.0
        %1207 = vmatprep.subr.mxu0 0.0
        %1208 = vmatpush1.msra.mxu0 0.0
        %1209 = vmatprep.subr.mxu0 0.0
        %1210 = vmatpush1.msra.mxu0 0.0
        %1211 = vmatprep.subr.mxu0 0.0
        %1212 = vmatpush1.msra.mxu0 0.0
        %1213 = vmatprep.subr.mxu0 0.0
        %1214 = vmatpush1.msra.mxu0 0.0
        %1215 = vmatprep.subr.mxu0 0.0
        %1216 = vmatpush1.msra.mxu0 0.0
        %1217 = vmatprep.subr.mxu0 0.0
        %1218 = vmatpush1.msra.mxu0 0.0
        %1219 = vmatprep.subr.mxu0 0.0
        %1220 = vmatpush1.msra.mxu0 0.0
        %1221 = vmatprep.mubr.f32.mxu0 0.0
        %1222 = vmatmul.mubr.f32.gmra.mrb[0].mxu0 %v1057
        %v1223 = vpop.f32.mrb[0].mxu0
        %v1224 = vadd.f32 %v1042, %v1223
        %v1225 = vpop.f32.mrb[0].mxu0
        %v1226 = vadd.f32 %v1043, %v1225
        %1227 = vmatprep.mubr.f32.mxu0 0.0
        %1228 = vmatmul.mubr.f32.gmra.mrb[0].mxu0 %v1060
        %v1229 = vpop.f32.mrb[0].mxu0
        %v1230 = vadd.f32 %v1046, %v1229
        %v1231 = vpop.f32.mrb[0].mxu0
        %v1232 = vadd.f32 %v1047, %v1231
        %1233 = vmatprep.mubr.f32.mxu0 0.0
        %1234 = vmatmul.mubr.f32.gmra.mrb[0].mxu0 %v1063
        %v1235 = vpop.f32.mrb[0].mxu0
        %v1236 = vadd.f32 %v1050, %v1235
        %v1237 = vpop.f32.mrb[0].mxu0
        %v1238 = vadd.f32 %v1051, %v1237
        %1239 = vmatprep.mubr.f32.mxu0 0.0
        %1240 = vmatmul.mubr.f32.gmra.mrb[0].mxu0 %v1066
        %v1241 = vpop.f32.mrb[0].mxu0
        %v1242 = vadd.f32 %v1054, %v1241
        %v1243 = vpop.f32.mrb[0].mxu0
        %v1244 = vadd.f32 %v1055, %v1243
        %1245 = vdwg.mxu0
        %v1246 = vtanh.pop %v1135
        %v1247 = vtanh.pop %v1137
        %v1248 = vtanh.pop %v1224
        %v1249 = vtanh.pop %v1226
        %v1250 = vtanh.pop %v1141
        %v1251 = vtanh.pop %v1143
        %v1252 = vtanh.pop %v1230
        %v1253 = vtanh.pop %v1232
        %v1254 = vtanh.pop %v1147
        %v1255 = vtanh.pop %v1149
        %v1256 = vtanh.pop %v1236
        %v1257 = vtanh.pop %v1238
        %v1258 = vtanh.pop %v1153
        %v1259 = vtanh.pop %v1155
        %v1260 = vtanh.pop %v1242
        %v1261 = vtanh.pop %v1244
        %v1262 = vld [vmem:[%s9] sm:$0x1]
        %v1263 = vld [vmem:[%s10] sm:$0xf]
        %v1265 = vlaneseq
        %v1266 = vshrl.u32 %v1265, 7
        %v1267 = vsub.s32 0, %v1266
        %v1268 = vrot.slane %v1263, %v1267
        %v1269 = vlaneseq
        %v1270 = vshrl.u32 %v1269, 7
        %v1271 = vsub.s32 1, %v1270
        %v1272 = vrot.slane %v1263, %v1271
        %v1273 = vlaneseq
        %v1274 = vshrl.u32 %v1273, 7
        %v1275 = vsub.s32 2, %v1274
        %v1276 = vrot.slane %v1263, %v1275
        %v1277 = vlaneseq
        %v1278 = vshrl.u32 %v1277, 7
        %v1279 = vsub.s32 3, %v1278
        %v1280 = vrot.slane %v1263, %v1279
        %v1286 = vsel %vm603, %v1262, 0
        %1288 = vmatprep.subr.mxu0 %v1247
        %1289 = vmatpush1.msra.mxu0 %v1246
        %1290 = vmatprep.subr.mxu0 %v1251
        %1291 = vmatpush1.msra.mxu0 %v1250
        %1292 = vmatprep.subr.mxu0 %v1255
        %1293 = vmatpush1.msra.mxu0 %v1254
        %1294 = vmatprep.subr.mxu0 %v1259
        %1295 = vmatpush1.msra.mxu0 %v1258
        %1296 = vmatprep.subr.mxu0 0.0
        %1297 = vmatpush1.msra.mxu0 0.0
        %1298 = vmatprep.subr.mxu0 0.0
        %1299 = vmatpush1.msra.mxu0 0.0
        %1300 = vmatprep.subr.mxu0 0.0
        %1301 = vmatpush1.msra.mxu0 0.0
        %1302 = vmatprep.subr.mxu0 0.0
        %1303 = vmatpush1.msra.mxu0 0.0
        %1304 = vmatprep.subr.mxu0 0.0
        %1305 = vmatpush1.msra.mxu0 0.0
        %1306 = vmatprep.subr.mxu0 0.0
        %1307 = vmatpush1.msra.mxu0 0.0
        %1308 = vmatprep.subr.mxu0 0.0
        %1309 = vmatpush1.msra.mxu0 0.0
        %1310 = vmatprep.subr.mxu0 0.0
        %1311 = vmatpush1.msra.mxu0 0.0
        %1312 = vmatprep.subr.mxu0 0.0
        %1313 = vmatpush1.msra.mxu0 0.0
        %1314 = vmatprep.subr.mxu0 0.0
        %1315 = vmatpush1.msra.mxu0 0.0
        %1316 = vmatprep.subr.mxu0 0.0
        %1317 = vmatpush1.msra.mxu0 0.0
        %1318 = vmatprep.subr.mxu0 0.0
        %1319 = vmatpush1.msra.mxu0 0.0
        %1320 = vmatprep.subr.mxu0 0.0
        %1321 = vmatpush1.msra.mxu0 0.0
        %1322 = vmatprep.subr.mxu0 0.0
        %1323 = vmatpush1.msra.mxu0 0.0
        %1324 = vmatprep.subr.mxu0 0.0
        %1325 = vmatpush1.msra.mxu0 0.0
        %1326 = vmatprep.subr.mxu0 0.0
        %1327 = vmatpush1.msra.mxu0 0.0
        %1328 = vmatprep.subr.mxu0 0.0
        %1329 = vmatpush1.msra.mxu0 0.0
        %1330 = vmatprep.subr.mxu0 0.0
        %1331 = vmatpush1.msra.mxu0 0.0
        %1332 = vmatprep.subr.mxu0 0.0
        %1333 = vmatpush1.msra.mxu0 0.0
        %1334 = vmatprep.subr.mxu0 0.0
        %1335 = vmatpush1.msra.mxu0 0.0
        %1336 = vmatprep.subr.mxu0 0.0
        %1337 = vmatpush1.msra.mxu0 0.0
        %1338 = vmatprep.subr.mxu0 0.0
        %1339 = vmatpush1.msra.mxu0 0.0
        %1340 = vmatprep.subr.mxu0 0.0
        %1341 = vmatpush1.msra.mxu0 0.0
        %1342 = vmatprep.subr.mxu0 0.0
        %1343 = vmatpush1.msra.mxu0 0.0
        %1344 = vmatprep.subr.mxu0 0.0
        %1345 = vmatpush1.msra.mxu0 0.0
        %1346 = vmatprep.subr.mxu0 0.0
        %1347 = vmatpush1.msra.mxu0 0.0
        %1348 = vmatprep.subr.mxu0 0.0
        %1349 = vmatpush1.msra.mxu0 0.0
        %1350 = vmatprep.subr.mxu0 0.0
        %1351 = vmatpush1.msra.mxu0 0.0
        %1352 = vmatprep.mubr.f32.mxu0 0.0
        %1353 = vmatmul.mubr.f32.gmra.mrb[0].mxu0 %v1286
        %v1354 = vpop.f32.mrb[0].mxu0
        %v1355 = vadd.f32 %v1268, %v1354
        %v1356 = vpop.f32.mrb[0].mxu0
        %v1357 = vadd.f32 %v1272, %v1356
        %1358 = vdwg.mxu0
        %1359 = vmatprep.subr.mxu0 %v1249
        %1360 = vmatpush1.msra.mxu0 %v1248
        %1361 = vmatprep.subr.mxu0 %v1253
        %1362 = vmatpush1.msra.mxu0 %v1252
        %1363 = vmatprep.subr.mxu0 %v1257
        %1364 = vmatpush1.msra.mxu0 %v1256
        %1365 = vmatprep.subr.mxu0 %v1261
        %1366 = vmatpush1.msra.mxu0 %v1260
        %1367 = vmatprep.subr.mxu0 0.0
        %1368 = vmatpush1.msra.mxu0 0.0
        %1369 = vmatprep.subr.mxu0 0.0
        %1370 = vmatpush1.msra.mxu0 0.0
        %1371 = vmatprep.subr.mxu0 0.0
        %1372 = vmatpush1.msra.mxu0 0.0
        %1373 = vmatprep.subr.mxu0 0.0
        %1374 = vmatpush1.msra.mxu0 0.0
        %1375 = vmatprep.subr.mxu0 0.0
        %1376 = vmatpush1.msra.mxu0 0.0
        %1377 = vmatprep.subr.mxu0 0.0
        %1378 = vmatpush1.msra.mxu0 0.0
        %1379 = vmatprep.subr.mxu0 0.0
        %1380 = vmatpush1.msra.mxu0 0.0
        %1381 = vmatprep.subr.mxu0 0.0
        %1382 = vmatpush1.msra.mxu0 0.0
        %1383 = vmatprep.subr.mxu0 0.0
        %1384 = vmatpush1.msra.mxu0 0.0
        %1385 = vmatprep.subr.mxu0 0.0
        %1386 = vmatpush1.msra.mxu0 0.0
        %1387 = vmatprep.subr.mxu0 0.0
        %1388 = vmatpush1.msra.mxu0 0.0
        %1389 = vmatprep.subr.mxu0 0.0
        %1390 = vmatpush1.msra.mxu0 0.0
        %1391 = vmatprep.subr.mxu0 0.0
        %1392 = vmatpush1.msra.mxu0 0.0
        %1393 = vmatprep.subr.mxu0 0.0
        %1394 = vmatpush1.msra.mxu0 0.0
        %1395 = vmatprep.subr.mxu0 0.0
        %1396 = vmatpush1.msra.mxu0 0.0
        %1397 = vmatprep.subr.mxu0 0.0
        %1398 = vmatpush1.msra.mxu0 0.0
        %1399 = vmatprep.subr.mxu0 0.0
        %1400 = vmatpush1.msra.mxu0 0.0
        %1401 = vmatprep.subr.mxu0 0.0
        %1402 = vmatpush1.msra.mxu0 0.0
        %1403 = vmatprep.subr.mxu0 0.0
        %1404 = vmatpush1.msra.mxu0 0.0
        %1405 = vmatprep.subr.mxu0 0.0
        %1406 = vmatpush1.msra.mxu0 0.0
        %1407 = vmatprep.subr.mxu0 0.0
        %1408 = vmatpush1.msra.mxu0 0.0
        %1409 = vmatprep.subr.mxu0 0.0
        %1410 = vmatpush1.msra.mxu0 0.0
        %1411 = vmatprep.subr.mxu0 0.0
        %1412 = vmatpush1.msra.mxu0 0.0
        %1413 = vmatprep.subr.mxu0 0.0
        %1414 = vmatpush1.msra.mxu0 0.0
        %1415 = vmatprep.subr.mxu0 0.0
        %1416 = vmatpush1.msra.mxu0 0.0
        %1417 = vmatprep.subr.mxu0 0.0
        %1418 = vmatpush1.msra.mxu0 0.0
        %1419 = vmatprep.subr.mxu0 0.0
        %1420 = vmatpush1.msra.mxu0 0.0
        %1421 = vmatprep.subr.mxu0 0.0
        %1422 = vmatpush1.msra.mxu0 0.0
        %1423 = vmatprep.mubr.f32.mxu0 0.0
        %1424 = vmatmul.mubr.f32.gmra.mrb[0].mxu0 %v1286
        %v1425 = vpop.f32.mrb[0].mxu0
        %v1426 = vadd.f32 %v1276, %v1425
        %v1427 = vpop.f32.mrb[0].mxu0
        %v1428 = vadd.f32 %v1280, %v1427
        %1429 = vdwg.mxu0
        %v1434 = vcombine.low %v1355, %v1357
        %v1435 = vcombine.low %v1426, %v1428
        %v1437 = vunpack.c.l.s4 1966171168
        %v1438 = vunpack.c.0.s8 %v1437
        %v1439 = vlaneseq
        %v1440 = vshrl.u32 %v1439, 7
        %v1441 = vsub.s32 %v1438, %v1440
        %v1442 = vrot.slane %v1434, %v1441
        %v1444 = vunpack.c.l.s4 1966171168
        %v1445 = vunpack.c.0.s8 %v1444
        %v1446 = vlaneseq
        %v1447 = vshrl.u32 %v1446, 7
        %v1448 = vsub.s32 %v1445, %v1447
        %v1449 = vrot.slane %v1435, %v1448
        %v1450 = vcombine.low %v1442, %v1449
        %v1452 = vunpack.c.l.s4 1966171168
        %v1453 = vunpack.c.0.s8 %v1452
        %v1454 = vlaneseq
        %v1455 = vshrl.u32 %v1454, 7
        %v1456 = vsub.s32 %v1453, %v1455
        %v1457 = vrot.slane %v1450, %v1456
        %v1459 = vlaneseq
        %vm1460 = vcmp.ge.s32.totalorder %v1459, 0
        %vm1461 = vcmp.lt.s32.totalorder %v1459, 512
        %vm1462 = vmand %vm1460, %vm1461
        %1463 = vst.msk [vmem:[%s466] sm:$0xf] %vm1462, %v1457
        %s1464 = sand.u32 %s273, 1
        %s1465 = scalar_lea.sflag [#allocation4], %s1464
        %s1466 = sand.u32 %s273, 1
        %s1467 = smul.addr %s1466, 4
        %s1468 = scalar_lea.vmem [#allocation13], %s1467
        // Predicated region
        $region89: #{tpu_custom_call.1} parent=63 // pred_check
          %p1469 = pneg %p283
        $region90: #{tpu_custom_call.1} parent=63 // pred_check_branch
          %1471 = sbr.rel (%p1469) target = $region92
        $region91: #{tpu_custom_call.1} parent=63 // pred_region
          %s1472 = smul.u32 4, %s29
          %s1474 = ssub.s32 64, 64
          %1475 = vsyncadd %s1465, %s1474
          %s1476 = smul.addr %s1472, 16
          %s1477 = scalar_lea.hbm %s11, %s1476
          %s1479 = sshll.u32 %s1468, 4
          %s1480 = int_to_ptr.vmem [resolvable:$true] %s1479
          %1482 = dma.vmem_to_hbm [thread:$0]  %s1480, 64, %s1477, %s1465
        $region92: #{tpu_custom_call.1} parent=63 // pred_fallthru
          _
      $region64: #{tpu_custom_call.1} parent=5 // pred_fallthru
        _
      %p1483 = scmp.le.s32.totalorder 2, %s24
      // Predicated region
      $region93: #{tpu_custom_call.1} parent=5 // pred_check
        %p1484 = pneg %p1483
      $region94: #{tpu_custom_call.1} parent=5 // pred_check_branch
        %1486 = sbr.rel (%p1484) target = $region96
      $region95: #{tpu_custom_call.1} parent=5 // pred_region
        %s1487 = ssub.s32 %s24, 2
        // Predicated region
        $region97: #{tpu_custom_call.1} parent=95 // pred_check
          %p1488 = pneg %p289
        $region98: #{tpu_custom_call.1} parent=95 // pred_check_branch
          %1490 = sbr.rel (%p1488) target = $region100
        $region99: #{tpu_custom_call.1} parent=95 // pred_region
          %s1491 = sand.u32 %s274, 1
          %s1492 = scalar_lea.sflag [#allocation4], %s1491
          %s1493 = sand.u32 %s274, 1
          %s1494 = smul.addr %s1493, 4
          %s1495 = scalar_lea.vmem [#allocation13], %s1494
          %1496 = dma.done %s1492, 64
        $region100: #{tpu_custom_call.1} parent=95 // pred_fallthru
          _
      $region96: #{tpu_custom_call.1} parent=5 // pred_fallthru
        _
    $region6: #{tpu_custom_call.1} parent=1 // loop_footer
      %s28 = sadd.s32 1, %s24
    $region7: #{tpu_custom_call.1} parent=1 // loop_footer_branch
      %23 = sbr.rel target = $region3
    $region8: #{tpu_custom_call.1} parent=1 // loop_exit
      _
    %1497 = vsyncpa [#allocation3], 1
    %s1498 = scalar_lea.sflag [#allocation3], 1
    %1499 = vsyncpa %s1498, 1
    %1500 = vsyncpa [#allocation6], 1
    %1501 = vsyncpa [#allocation9], 1
    %1502 = vsyncpa [#allocation12], 1
    %1503 = vsyncpa [#allocation4], 1
    %s1504 = scalar_lea.sflag [#allocation4], 1
    %1505 = vsyncpa %s1504, 1

</llo_original>
